<compile_context>
chip_gen: v6e
topology: v6e:2x2x1
jax: 0.10.0
libtpu: 0.0.40
codegen_flags: <defaults>
</compile_context>

<pallas_src>
import jax
import jax.numpy as jnp
from jax import lax
from jax.experimental import pallas as pl
from jax.experimental.pallas import tpu as pltpu


def _round_up(x, m):
    return (x + m - 1) // m * m


# ----------------------------- Pallas kernel ------------------------------- #

def _bilstm_decode_kernel(x_ref, lens_ref, wih_ref, whh_ref, b_ref, wdec_ref,
                          logits_ref, h_sc, c_sc, hbf_sc, gx_sc, mask_sc):
    """Fused bidirectional LSTM + decoder (both directions in one loop).

    x_ref     : (T*Bp, E)   bf16 time-major embedded inputs (flattened)
    lens_ref  : (Bp, 1)     int32 index of last valid token per example
    wih_ref   : (E, 8H)     bf16 fused W_ih^T, cols [i_f,i_b,f_f,f_b,g_f,g_b,o_f,o_b]
    whh_ref   : (2H, 8H)    bf16 fused W_hh^T (direction block-diagonal)
    b_ref     : (1, 8H)     f32  fused b_ih + b_hh
    wdec_ref  : (2H, Lp)    bf16 decoder weight^T, rows [fwd H | bwd H], lane padded
    logits_ref: (Bp, Lp)    f32  OUT: h_final @ wdec (partial logits, no bias)
    h_sc/c_sc : (Bp, 2H)    f32  carries, lanes [h_fwd | h_bwd]
    hbf_sc    : (Bp, 2H)    bf16 shadow of h feeding the MXU
    gx_sc     : (T*Bp, 8H)  f32  hoisted x @ W_ih + b for all timesteps
    mask_sc   : (T, Bp, 2H) f32  precomputed per-step carry-update masks
    """
    Bp, H2 = h_sc.shape
    H = H2 // 2
    G = 8 * H
    T = mask_sc.shape[0]

    # 1) Hoisted input projection for BOTH directions: one big MXU matmul.
    gx_sc[...] = (
        jnp.dot(x_ref[...], wih_ref[...], preferred_element_type=jnp.float32)
        + b_ref[...]
    )

    # 2) Precompute the carry-update masks off the serial chain:
    #    fwd half-lanes update when lens >= s, bwd half-lanes when lens >= T-1-s.
    s_id = lax.broadcasted_iota(jnp.int32, mask_sc.shape, 0)
    lane3 = lax.broadcasted_iota(jnp.int32, mask_sc.shape, 2)
    t_eff = jnp.where(lane3 < H, s_id, (T - 1) - s_id)
    mask_sc[...] = (lens_ref[...][None, :, :] >= t_eff).astype(jnp.float32)

    h_sc[...] = jnp.zeros_like(h_sc)
    c_sc[...] = jnp.zeros_like(c_sc)
    hbf_sc[...] = jnp.zeros_like(hbf_sc)

    # Hoisted lane-id masks over the fused gate vector (no broadcasts in-loop).
    glane = lax.broadcasted_iota(jnp.int32, (Bp, G), 1)
    is_fwd_col = (glane % (2 * H)) < H          # fwd vs bwd gate columns
    is_g = (glane >= 4 * H) & (glane < 6 * H)   # g-gate lanes get tanh

    def step(s, carry):
        rf = pl.multiple_of(s * Bp, Bp)              # fwd reads time s
        rb = pl.multiple_of((T - 1 - s) * Bp, Bp)    # bwd reads time T-1-s
        gx = jnp.where(is_fwd_col,
                       gx_sc[pl.ds(rf, Bp), :],
                       gx_sc[pl.ds(rb, Bp), :])
        gates = gx + jnp.dot(hbf_sc[...], whh_ref[...],
                             preferred_element_type=jnp.float32)   # (Bp, 8H)
        # Single full-width EUP pass: sigmoid(x) = 0.5*tanh(0.5x)+0.5.
        th = jnp.tanh(jnp.where(is_g, gates, 0.5 * gates))
        act = jnp.where(is_g, th, 0.5 * th + 0.5)
        i_g = act[:, 0:2 * H]
        f_g = act[:, 2 * H:4 * H]
        g_g = act[:, 4 * H:6 * H]
        o_g = act[:, 6 * H:8 * H]
        h_old = h_sc[...]
        c_old = c_sc[...]
        c_new = f_g * c_old + i_g * g_g
        h_new = o_g * jnp.tanh(c_new)
        # Freeze carries past the last valid token (packed-seq semantics):
        #   forward : final h == h at t == lens[b]
        #   backward: recurrence effectively starts at t == lens[b].
        m = mask_sc[s]                               # (Bp, 2H), precomputed
        h_upd = h_old + m * (h_new - h_old)
        c_sc[...] = c_old + m * (c_new - c_old)
        h_sc[...] = h_upd
        # bf16 shadow feeds the next step's MXU push directly.
        hbf_sc[...] = h_upd.astype(jnp.bfloat16)
        return carry

    # TODO(synk): switch to partial unroll (4-8) once T grows beyond a few dozen.
    lax.fori_loop(0, T, step, 0, unroll=True)

    # 3) Decoder folded into the finalize: one lane-dense (Bp, Lp) writeback
    #    that already sums the fwd/bwd contributions.
    logits_ref[...] = jnp.dot(hbf_sc[...], wdec_ref[...],
                              preferred_element_type=jnp.float32)


# ------------------------------ JAX wrapper -------------------------------- #

def pack_bilstm_params(fwd, bwd, w_dec, lane_pad=128):
    """Pack PyTorch-layout params into the fused kernel layout.

    Fused gate-column order (each block H wide): [i_f,i_b,f_f,f_b,g_f,g_b,o_f,o_b].
    Hidden-state lane order: [h_fwd | h_bwd].
    """
    wif, whf, bif, bhf = fwd
    wib, whb, bib, bhb = bwd
    H = whf.shape[1]
    L = w_dec.shape[0]
    Lp = _round_up(max(L, lane_pad), lane_pad)

    def fused_cols(w_f, w_b):                       # (4H, X) x2 -> (X, 8H)
        cols = []
        for k in range(4):
            cols.append(w_f[k * H:(k + 1) * H].T)
            cols.append(w_b[k * H:(k + 1) * H].T)
        return jnp.concatenate(cols, axis=1)

    wih_s = fused_cols(wif, wib).astype(jnp.bfloat16)                 # (E, 8H)

    whh = jnp.zeros((2 * H, 8 * H), jnp.float32)                      # direction block-diag
    for k in range(4):
        whh = whh.at[0:H, (2 * k) * H:(2 * k + 1) * H].set(whf[k * H:(k + 1) * H].T)
        whh = whh.at[H:2 * H, (2 * k + 1) * H:(2 * k + 2) * H].set(whb[k * H:(k + 1) * H].T)
    whh_s = whh.astype(jnp.bfloat16)                                  # (2H, 8H)

    bf = bif + bhf
    bb = bib + bhb
    b_s = jnp.concatenate(
        [jnp.concatenate([bf[k * H:(k + 1) * H], bb[k * H:(k + 1) * H]])
         for k in range(4)])[None, :].astype(jnp.float32)             # (1, 8H)

    wdec_s = (jnp.zeros((2 * H, Lp), jnp.float32)
              .at[:, :L].set(w_dec.T).astype(jnp.bfloat16))           # (2H, Lp)
    return wih_s, whh_s, b_s, wdec_s


@jax.jit
def sentiment_net_forward(tokens, emb_weight, wih_s, whh_s, b_s, wdec_s, b_dec):
    """Full forward pass mirroring SentimentNet.forward.  tokens: (B, T) int32."""
    B, T = tokens.shape
    E = wih_s.shape[0]
    H = whh_s.shape[0] // 2
    Lp = wdec_s.shape[1]
    L = b_dec.shape[0]

    # Pad batch to a full f32 sublane group so vreg/MXU rows are not mostly pad.
    Bp = _round_up(max(B, 8), 8)
    tokens_p = jnp.zeros((Bp, T), jnp.int32).at[:B, :].set(tokens)

    # lens[b] = index of the last non-zero token (0 if none) -- matches the
    # PyTorch while-loop.  Pad rows get lens=0 and are sliced away below.
    pos = jnp.arange(T, dtype=jnp.int32)[None, :]
    lens = jnp.max(jnp.where(tokens_p != 0, pos, 0), axis=1).astype(jnp.int32)

    # TODO(synk): at production vocab/E/T, fuse this gather into the kernel
    # (scalar-prefetched token ids + DMA row gather from an HBM embedding table).
    x_tm = emb_weight.astype(jnp.bfloat16)[tokens_p.T]                # (T, Bp, E)
    x2d = x_tm.reshape(T * Bp, E)

    logits_p = pl.pallas_call(
        _bilstm_decode_kernel,
        out_shape=jax.ShapeDtypeStruct((Bp, Lp), jnp.float32),
        grid_spec=pltpu.PrefetchScalarGridSpec(
            num_scalar_prefetch=0,
            grid=(1,),                      # both directions fused in one step
            in_specs=[
                pl.BlockSpec((T * Bp, E), lambda i: (0, 0)),
                pl.BlockSpec((Bp, 1), lambda i: (0, 0)),
                pl.BlockSpec((E, 8 * H), lambda i: (0, 0)),
                pl.BlockSpec((2 * H, 8 * H), lambda i: (0, 0)),
                pl.BlockSpec((1, 8 * H), lambda i: (0, 0)),
                pl.BlockSpec((2 * H, Lp), lambda i: (0, 0)),
            ],
            out_specs=pl.BlockSpec((Bp, Lp), lambda i: (0, 0)),
            scratch_shapes=[
                pltpu.VMEM((Bp, 2 * H), jnp.float32),        # h carry (f32)
                pltpu.VMEM((Bp, 2 * H), jnp.float32),        # c carry (f32)
                pltpu.VMEM((Bp, 2 * H), jnp.bfloat16),       # bf16 shadow of h
                pltpu.VMEM((T * Bp, 8 * H), jnp.float32),    # hoisted x@W_ih + b
                pltpu.VMEM((T, Bp, 2 * H), jnp.float32),     # per-step update masks
            ],
        ),
        compiler_params=pltpu.CompilerParams(
            dimension_semantics=("arbitrary",),
        ),
    )(x2d, lens[:, None], wih_s, whh_s, b_s, wdec_s)

    return logits_p[:B, :L] + b_dec[None, :]     # bias + slice lane/batch pads


# ------------------------- pure-JAX f32 reference --------------------------- #

def _ref_lstm_dir(x_seq, lens, w_ih, w_hh, b_ih, b_hh, reverse):
    B, T, _ = x_seq.shape
    H = w_hh.shape[1]
    h = jnp.zeros((B, H), jnp.float32)
    c = jnp.zeros((B, H), jnp.float32)
    order = range(T - 1, -1, -1) if reverse else range(T)
    for t in order:
        gates = x_seq[:, t] @ w_ih.T + h @ w_hh.T + b_ih + b_hh
        i = jax.nn.sigmoid(gates[:, :H])
        f = jax.nn.sigmoid(gates[:, H:2 * H])
        g = jnp.tanh(gates[:, 2 * H:3 * H])
        o = jax.nn.sigmoid(gates[:, 3 * H:])
        c_new = f * c + i * g
        h_new = o * jnp.tanh(c_new)
        upd = (lens >= t)[:, None]
        h = jnp.where(upd, h_new, h)
        c = jnp.where(upd, c_new, c)
    return h


def _ref_forward(tokens, emb_weight, fwd, bwd, w_dec, b_dec):
    _, T = tokens.shape
    pos = jnp.arange(T, dtype=jnp.int32)[None, :]
    lens = jnp.max(jnp.where(tokens != 0, pos, 0), axis=1)
    x = emb_weight[tokens]
    h_f = _ref_lstm_dir(x, lens, *fwd, reverse=False)
    h_b = _ref_lstm_dir(x, lens, *bwd, reverse=True)
    return jnp.concatenate([h_f, h_b], axis=1) @ w_dec.T + b_dec[None, :]


# --------------------------------- main ------------------------------------ #

if __name__ == "__main__":
    key = jax.random.PRNGKey(0)
    B, T = 2, 8
    vocab_size, embed_size, hidden_size, n_labels = 50, 32, 32, 3

    keys = jax.random.split(key, 6)
    emb_weight = jax.random.normal(keys[0], (vocab_size, embed_size), jnp.float32) * 0.1

    # Token ids with trailing zero padding (row 0: 5 valid, row 1: 7 valid).
    tok = jax.random.randint(keys[1], (B, T), 1, vocab_size, dtype=jnp.int32)
    valid = jnp.array([5, 7], dtype=jnp.int32)[:, None]
    tokens = jnp.where(jnp.arange(T)[None, :] < valid, tok, 0)

    def init_dir(k, E, H, scale=0.1):
        k1, k2, k3, k4 = jax.random.split(k, 4)
        return (jax.random.normal(k1, (4 * H, E), jnp.float32) * scale,
                jax.random.normal(k2, (4 * H, H), jnp.float32) * scale,
                jax.random.normal(k3, (4 * H,), jnp.float32) * scale,
                jax.random.normal(k4, (4 * H,), jnp.float32) * scale)

    fwd = init_dir(keys[2], embed_size, hidden_size)
    bwd = init_dir(keys[3], embed_size, hidden_size)
    w_dec = jax.random.normal(keys[4], (n_labels, 2 * hidden_size), jnp.float32) * 0.1
    b_dec = jax.random.normal(keys[5], (n_labels,), jnp.float32) * 0.1

    wih_s, whh_s, b_s, wdec_s = pack_bilstm_params(fwd, bwd, w_dec)

    logits = sentiment_net_forward(tokens, emb_weight, wih_s, whh_s, b_s,
                                   wdec_s, b_dec)
    jax.block_until_ready(logits)
    assert logits.shape == (B, n_labels)
    assert bool(jnp.all(jnp.isfinite(logits)))

    ref = _ref_forward(tokens, emb_weight, fwd, bwd, w_dec, b_dec)
    max_err = float(jnp.max(jnp.abs(logits - ref)))
    assert max_err < 3e-2, f"kernel/reference mismatch: {max_err}"
    print("KERNEL_OK")
</pallas_src>

<mosaic_0001>
module attributes {stable_mosaic.version = 11 : i64} {
  func.func @_bilstm_decode_kernel(%arg0: i32, %arg1: memref<64x32xbf16, #tpu.memory_space<vmem>>, %arg2: memref<8x1xi32, #tpu.memory_space<vmem>>, %arg3: memref<32x256xbf16, #tpu.memory_space<vmem>>, %arg4: memref<64x256xbf16, #tpu.memory_space<vmem>>, %arg5: memref<1x256xf32, #tpu.memory_space<vmem>>, %arg6: memref<64x128xbf16, #tpu.memory_space<vmem>>, %arg7: memref<8x128xf32, #tpu.memory_space<vmem>>, %arg8: memref<8x64xf32, #tpu.memory_space<vmem>>, %arg9: memref<8x64xf32, #tpu.memory_space<vmem>>, %arg10: memref<8x64xbf16, #tpu.memory_space<vmem>>, %arg11: memref<64x256xf32, #tpu.memory_space<vmem>>, %arg12: memref<8x8x64xf32, #tpu.memory_space<vmem>>) attributes {dimension_semantics = [#tpu.dimension_semantics<arbitrary>], iteration_bounds = array<i64: 1>, scalar_prefetch = 0 : i64, scratch_operands = 5 : i64, tpu.core_type = #tpu.core_type<tc>, window_params = [{pipeline_mode = #tpu.pipeline_mode<synchronous>, transform_indices = @transform_0, window_bounds = array<i64: 64, 32>}, {pipeline_mode = #tpu.pipeline_mode<synchronous>, transform_indices = @transform_1, window_bounds = array<i64: 8, 1>}, {pipeline_mode = #tpu.pipeline_mode<synchronous>, transform_indices = @transform_2, window_bounds = array<i64: 32, 256>}, {pipeline_mode = #tpu.pipeline_mode<synchronous>, transform_indices = @transform_3, window_bounds = array<i64: 64, 256>}, {pipeline_mode = #tpu.pipeline_mode<synchronous>, transform_indices = @transform_4, window_bounds = array<i64: 1, 256>}, {pipeline_mode = #tpu.pipeline_mode<synchronous>, transform_indices = @transform_5, window_bounds = array<i64: 64, 128>}, {pipeline_mode = #tpu.pipeline_mode<synchronous>, transform_indices = @transform_6, window_bounds = array<i64: 8, 128>}]} {
    %c0 = arith.constant 0 : index
    %c0_0 = arith.constant 0 : index
    %0 = vector.load %arg1[%c0, %c0_0] : memref<64x32xbf16, #tpu.memory_space<vmem>>, vector<64x32xbf16>
    %c0_1 = arith.constant 0 : index
    %c0_2 = arith.constant 0 : index
    %1 = vector.load %arg3[%c0_1, %c0_2] : memref<32x256xbf16, #tpu.memory_space<vmem>>, vector<32x256xbf16>
    %cst = arith.constant dense<0.000000e+00> : vector<64x256xf32>
    %2 = tpu.matmul %0, %1, %cst {dimension_numbers = #tpu.dot_dimension_numbers<[1], [0], [0], [1], [0, 0, 1, 1], [], []>} : vector<64x32xbf16>, vector<32x256xbf16>, vector<64x256xf32> -> vector<64x256xf32>
    %c0_3 = arith.constant 0 : index
    %c0_4 = arith.constant 0 : index
    %3 = vector.load %arg5[%c0_3, %c0_4] : memref<1x256xf32, #tpu.memory_space<vmem>>, vector<1x256xf32>
    %4 = vector.broadcast %3 : vector<1x256xf32> to vector<64x256xf32>
    %5 = arith.addf %2, %4 : vector<64x256xf32>
    %c0_5 = arith.constant 0 : index
    %c0_6 = arith.constant 0 : index
    %6 = vector.load %arg11[%c0_5, %c0_6] : memref<64x256xf32, #tpu.memory_space<vmem>>, vector<64x256xf32>
    tpu.vector_store %arg11[%c0_5, %c0_6], %5 {strides = array<i32>} : memref<64x256xf32, #tpu.memory_space<vmem>>, vector<64x256xf32>,
    %7 = tpu.iota {dimensions = array<i32: 0>} : vector<8x8x64xi32>
    %8 = tpu.iota {dimensions = array<i32: 2>} : vector<8x8x64xi32>
    %c32_i32 = arith.constant 32 : i32
    %9 = vector.broadcast %c32_i32 : i32 to vector<8x8x64xi32>
    %10 = arith.cmpi slt, %8, %9 : vector<8x8x64xi32>
    %c7_i32 = arith.constant 7 : i32
    %11 = vector.broadcast %c7_i32 : i32 to vector<8x8x64xi32>
    %12 = arith.subi %11, %7 : vector<8x8x64xi32>
    %13 = arith.select %10, %7, %12 : vector<8x8x64xi1>, vector<8x8x64xi32>
    %c0_7 = arith.constant 0 : index
    %c0_8 = arith.constant 0 : index
    %14 = vector.load %arg2[%c0_7, %c0_8] : memref<8x1xi32, #tpu.memory_space<vmem>>, vector<8x1xi32>
    %15 = vector.shape_cast %14 : vector<8x1xi32> to vector<1x8x1xi32>
    %16 = vector.broadcast %15 : vector<1x8x1xi32> to vector<8x8x64xi32>
    %17 = arith.cmpi sge, %16, %13 : vector<8x8x64xi32>
    %18 = arith.extui %17 : vector<8x8x64xi1> to vector<8x8x64xi32>
    %19 = arith.sitofp %18 : vector<8x8x64xi32> to vector<8x8x64xf32>
    %c0_9 = arith.constant 0 : index
    %c0_10 = arith.constant 0 : index
    %c0_11 = arith.constant 0 : index
    %20 = vector.load %arg12[%c0_9, %c0_10, %c0_11] : memref<8x8x64xf32, #tpu.memory_space<vmem>>, vector<8x8x64xf32>
    tpu.vector_store %arg12[%c0_9, %c0_10, %c0_11], %19 {strides = array<i32>} : memref<8x8x64xf32, #tpu.memory_space<vmem>>, vector<8x8x64xf32>,
    %cst_12 = arith.constant 0.000000e+00 : f32
    %21 = vector.broadcast %cst_12 : f32 to vector<8x64xf32>
    %c0_13 = arith.constant 0 : index
    %c0_14 = arith.constant 0 : index
    %22 = vector.load %arg8[%c0_13, %c0_14] : memref<8x64xf32, #tpu.memory_space<vmem>>, vector<8x64xf32>
    tpu.vector_store %arg8[%c0_13, %c0_14], %21 {strides = array<i32>} : memref<8x64xf32, #tpu.memory_space<vmem>>, vector<8x64xf32>,
    %cst_15 = arith.constant 0.000000e+00 : f32
    %23 = vector.broadcast %cst_15 : f32 to vector<8x64xf32>
    %c0_16 = arith.constant 0 : index
    %c0_17 = arith.constant 0 : index
    %24 = vector.load %arg9[%c0_16, %c0_17] : memref<8x64xf32, #tpu.memory_space<vmem>>, vector<8x64xf32>
    tpu.vector_store %arg9[%c0_16, %c0_17], %23 {strides = array<i32>} : memref<8x64xf32, #tpu.memory_space<vmem>>, vector<8x64xf32>,
    %cst_18 = arith.constant 0.000000e+00 : bf16
    %25 = vector.broadcast %cst_18 : bf16 to vector<8x64xbf16>
    %c0_19 = arith.constant 0 : index
    %c0_20 = arith.constant 0 : index
    %26 = vector.load %arg10[%c0_19, %c0_20] : memref<8x64xbf16, #tpu.memory_space<vmem>>, vector<8x64xbf16>
    tpu.vector_store %arg10[%c0_19, %c0_20], %25 {strides = array<i32>} : memref<8x64xbf16, #tpu.memory_space<vmem>>, vector<8x64xbf16>,
    %27 = tpu.iota {dimensions = array<i32: 1>} : vector<8x256xi32>
    %c64_i32 = arith.constant 64 : i32
    %c0_i32 = arith.constant 0 : i32
    %28 = arith.cmpi eq, %c64_i32, %c0_i32 : i32
    %c1_i32 = arith.constant 1 : i32
    %29 = arith.select %28, %c1_i32, %c64_i32 : i32
    %30 = vector.broadcast %29 : i32 to vector<8x256xi32>
    %31 = arith.remsi %27, %30 : vector<8x256xi32>
    %c0_i32_21 = arith.constant 0 : i32
    %32 = vector.broadcast %c0_i32_21 : i32 to vector<8x256xi32>
    %33 = arith.cmpi ne, %31, %32 : vector<8x256xi32>
    %c0_i32_22 = arith.constant 0 : i32
    %34 = vector.broadcast %c0_i32_22 : i32 to vector<8x256xi32>
    %35 = arith.cmpi slt, %31, %34 : vector<8x256xi32>
    %c0_i32_23 = arith.constant 0 : i32
    %36 = arith.cmpi slt, %29, %c0_i32_23 : i32
    %37 = vector.broadcast %36 : i1 to vector<8x256xi1>
    %38 = vector.broadcast %37 : vector<8x256xi1> to vector<8x256xi1>
    %39 = arith.xori %35, %38 : vector<8x256xi1>
    %40 = arith.andi %39, %33 : vector<8x256xi1>
    %41 = vector.broadcast %29 : i32 to vector<8x256xi32>
    %42 = arith.addi %31, %41 : vector<8x256xi32>
    %43 = arith.select %40, %42, %31 : vector<8x256xi1>, vector<8x256xi32>
    %c32_i32_24 = arith.constant 32 : i32
    %44 = vector.broadcast %c32_i32_24 : i32 to vector<8x256xi32>
    %45 = arith.cmpi slt, %43, %44 : vector<8x256xi32>
    %c128_i32 = arith.constant 128 : i32
    %46 = vector.broadcast %c128_i32 : i32 to vector<8x256xi32>
    %47 = arith.cmpi sge, %27, %46 : vector<8x256xi32>
    %c192_i32 = arith.constant 192 : i32
    %48 = vector.broadcast %c192_i32 : i32 to vector<8x256xi32>
    %49 = arith.cmpi slt, %27, %48 : vector<8x256xi32>
    %50 = arith.andi %47, %49 : vector<8x256xi1>
    %c0_i32_25 = arith.constant 0 : i32
    %c8_i32 = arith.constant 8 : i32
    %51 = arith.muli %c0_i32_25, %c8_i32 : i32
    %52 = tpu.assume_multiple %51, 8 : i32
    %c7_i32_26 = arith.constant 7 : i32
    %53 = arith.subi %c7_i32_26, %c0_i32_25 : i32
    %c8_i32_27 = arith.constant 8 : i32
    %54 = arith.muli %53, %c8_i32_27 : i32
    %55 = tpu.assume_multiple %54, 8 : i32
    %56 = arith.index_cast %52 : i32 to index
    %c0_28 = arith.constant 0 : index
    %57 = vector.load %arg11[%56, %c0_28] : memref<64x256xf32, #tpu.memory_space<vmem>>, vector<8x256xf32>
    %58 = arith.index_cast %55 : i32 to index
    %c0_29 = arith.constant 0 : index
    %59 = vector.load %arg11[%58, %c0_29] : memref<64x256xf32, #tpu.memory_space<vmem>>, vector<8x256xf32>
    %60 = arith.select %45, %57, %59 : vector<8x256xi1>, vector<8x256xf32>
    %c0_30 = arith.constant 0 : index
    %c0_31 = arith.constant 0 : index
    %61 = vector.load %arg10[%c0_30, %c0_31] : memref<8x64xbf16, #tpu.memory_space<vmem>>, vector<8x64xbf16>
    %c0_32 = arith.constant 0 : index
    %c0_33 = arith.constant 0 : index
    %62 = vector.load %arg4[%c0_32, %c0_33] : memref<64x256xbf16, #tpu.memory_space<vmem>>, vector<64x256xbf16>
    %cst_34 = arith.constant dense<0.000000e+00> : vector<8x256xf32>
    %63 = tpu.matmul %61, %62, %cst_34 {dimension_numbers = #tpu.dot_dimension_numbers<[1], [0], [0], [1], [0, 0, 1, 1], [], []>} : vector<8x64xbf16>, vector<64x256xbf16>, vector<8x256xf32> -> vector<8x256xf32>
    %64 = arith.addf %60, %63 : vector<8x256xf32>
    %cst_35 = arith.constant 5.000000e-01 : f32
    %65 = vector.broadcast %cst_35 : f32 to vector<8x256xf32>
    %66 = arith.mulf %65, %64 : vector<8x256xf32>
    %67 = arith.select %50, %64, %66 : vector<8x256xi1>, vector<8x256xf32>
    %68 = math.tanh %67 : vector<8x256xf32>
    %cst_36 = arith.constant 5.000000e-01 : f32
    %69 = vector.broadcast %cst_36 : f32 to vector<8x256xf32>
    %70 = arith.mulf %69, %68 : vector<8x256xf32>
    %cst_37 = arith.constant 5.000000e-01 : f32
    %71 = vector.broadcast %cst_37 : f32 to vector<8x256xf32>
    %72 = arith.addf %70, %71 : vector<8x256xf32>
    %73 = arith.select %50, %68, %72 : vector<8x256xi1>, vector<8x256xf32>
    %74 = vector.extract_strided_slice %73 {offsets = [0, 0], sizes = [8, 64], strides = [1, 1]} : vector<8x256xf32> to vector<8x64xf32>
    %75 = vector.extract_strided_slice %73 {offsets = [0, 64], sizes = [8, 64], strides = [1, 1]} : vector<8x256xf32> to vector<8x64xf32>
    %76 = vector.extract_strided_slice %73 {offsets = [0, 128], sizes = [8, 64], strides = [1, 1]} : vector<8x256xf32> to vector<8x64xf32>
    %77 = vector.extract_strided_slice %73 {offsets = [0, 192], sizes = [8, 64], strides = [1, 1]} : vector<8x256xf32> to vector<8x64xf32>
    %c0_38 = arith.constant 0 : index
    %c0_39 = arith.constant 0 : index
    %78 = vector.load %arg8[%c0_38, %c0_39] : memref<8x64xf32, #tpu.memory_space<vmem>>, vector<8x64xf32>
    %c0_40 = arith.constant 0 : index
    %c0_41 = arith.constant 0 : index
    %79 = vector.load %arg9[%c0_40, %c0_41] : memref<8x64xf32, #tpu.memory_space<vmem>>, vector<8x64xf32>
    %80 = arith.mulf %75, %79 : vector<8x64xf32>
    %81 = arith.mulf %74, %76 : vector<8x64xf32>
    %82 = arith.addf %80, %81 : vector<8x64xf32>
    %83 = math.tanh %82 : vector<8x64xf32>
    %84 = arith.mulf %77, %83 : vector<8x64xf32>
    %85 = arith.index_cast %c0_i32_25 : i32 to index
    %c0_42 = arith.constant 0 : index
    %c0_43 = arith.constant 0 : index
    %86 = vector.load %arg12[%85, %c0_42, %c0_43] : memref<8x8x64xf32, #tpu.memory_space<vmem>>, vector<1x8x64xf32>
    %87 = vector.shape_cast %86 : vector<1x8x64xf32> to vector<8x64xf32>
    %88 = arith.subf %84, %78 : vector<8x64xf32>
    %89 = arith.mulf %87, %88 : vector<8x64xf32>
    %90 = arith.addf %78, %89 : vector<8x64xf32>
    %91 = arith.subf %82, %79 : vector<8x64xf32>
    %92 = arith.mulf %87, %91 : vector<8x64xf32>
    %93 = arith.addf %79, %92 : vector<8x64xf32>
    %c0_44 = arith.constant 0 : index
    %c0_45 = arith.constant 0 : index
    %94 = vector.load %arg9[%c0_44, %c0_45] : memref<8x64xf32, #tpu.memory_space<vmem>>, vector<8x64xf32>
    tpu.vector_store %arg9[%c0_44, %c0_45], %93 {strides = array<i32>} : memref<8x64xf32, #tpu.memory_space<vmem>>, vector<8x64xf32>,
    %c0_46 = arith.constant 0 : index
    %c0_47 = arith.constant 0 : index
    %95 = vector.load %arg8[%c0_46, %c0_47] : memref<8x64xf32, #tpu.memory_space<vmem>>, vector<8x64xf32>
    tpu.vector_store %arg8[%c0_46, %c0_47], %90 {strides = array<i32>} : memref<8x64xf32, #tpu.memory_space<vmem>>, vector<8x64xf32>,
    %96 = arith.truncf %90 : vector<8x64xf32> to vector<8x64xbf16>
    %c0_48 = arith.constant 0 : index
    %c0_49 = arith.constant 0 : index
    %97 = vector.load %arg10[%c0_48, %c0_49] : memref<8x64xbf16, #tpu.memory_space<vmem>>, vector<8x64xbf16>
    tpu.vector_store %arg10[%c0_48, %c0_49], %96 {strides = array<i32>} : memref<8x64xbf16, #tpu.memory_space<vmem>>, vector<8x64xbf16>,
    %c1_i32_50 = arith.constant 1 : i32
    %c8_i32_51 = arith.constant 8 : i32
    %98 = arith.muli %c1_i32_50, %c8_i32_51 : i32
    %99 = tpu.assume_multiple %98, 8 : i32
    %c7_i32_52 = arith.constant 7 : i32
    %100 = arith.subi %c7_i32_52, %c1_i32_50 : i32
    %c8_i32_53 = arith.constant 8 : i32
    %101 = arith.muli %100, %c8_i32_53 : i32
    %102 = tpu.assume_multiple %101, 8 : i32
    %103 = arith.index_cast %99 : i32 to index
    %c0_54 = arith.constant 0 : index
    %104 = vector.load %arg11[%103, %c0_54] : memref<64x256xf32, #tpu.memory_space<vmem>>, vector<8x256xf32>
    %105 = arith.index_cast %102 : i32 to index
    %c0_55 = arith.constant 0 : index
    %106 = vector.load %arg11[%105, %c0_55] : memref<64x256xf32, #tpu.memory_space<vmem>>, vector<8x256xf32>
    %107 = arith.select %45, %104, %106 : vector<8x256xi1>, vector<8x256xf32>
    %c0_56 = arith.constant 0 : index
    %c0_57 = arith.constant 0 : index
    %108 = vector.load %arg10[%c0_56, %c0_57] : memref<8x64xbf16, #tpu.memory_space<vmem>>, vector<8x64xbf16>
    %c0_58 = arith.constant 0 : index
    %c0_59 = arith.constant 0 : index
    %109 = vector.load %arg4[%c0_58, %c0_59] : memref<64x256xbf16, #tpu.memory_space<vmem>>, vector<64x256xbf16>
    %cst_60 = arith.constant dense<0.000000e+00> : vector<8x256xf32>
    %110 = tpu.matmul %108, %109, %cst_60 {dimension_numbers = #tpu.dot_dimension_numbers<[1], [0], [0], [1], [0, 0, 1, 1], [], []>} : vector<8x64xbf16>, vector<64x256xbf16>, vector<8x256xf32> -> vector<8x256xf32>
    %111 = arith.addf %107, %110 : vector<8x256xf32>
    %cst_61 = arith.constant 5.000000e-01 : f32
    %112 = vector.broadcast %cst_61 : f32 to vector<8x256xf32>
    %113 = arith.mulf %112, %111 : vector<8x256xf32>
    %114 = arith.select %50, %111, %113 : vector<8x256xi1>, vector<8x256xf32>
    %115 = math.tanh %114 : vector<8x256xf32>
    %cst_62 = arith.constant 5.000000e-01 : f32
    %116 = vector.broadcast %cst_62 : f32 to vector<8x256xf32>
    %117 = arith.mulf %116, %115 : vector<8x256xf32>
    %cst_63 = arith.constant 5.000000e-01 : f32
    %118 = vector.broadcast %cst_63 : f32 to vector<8x256xf32>
    %119 = arith.addf %117, %118 : vector<8x256xf32>
    %120 = arith.select %50, %115, %119 : vector<8x256xi1>, vector<8x256xf32>
    %121 = vector.extract_strided_slice %120 {offsets = [0, 0], sizes = [8, 64], strides = [1, 1]} : vector<8x256xf32> to vector<8x64xf32>
    %122 = vector.extract_strided_slice %120 {offsets = [0, 64], sizes = [8, 64], strides = [1, 1]} : vector<8x256xf32> to vector<8x64xf32>
    %123 = vector.extract_strided_slice %120 {offsets = [0, 128], sizes = [8, 64], strides = [1, 1]} : vector<8x256xf32> to vector<8x64xf32>
    %124 = vector.extract_strided_slice %120 {offsets = [0, 192], sizes = [8, 64], strides = [1, 1]} : vector<8x256xf32> to vector<8x64xf32>
    %c0_64 = arith.constant 0 : index
    %c0_65 = arith.constant 0 : index
    %125 = vector.load %arg8[%c0_64, %c0_65] : memref<8x64xf32, #tpu.memory_space<vmem>>, vector<8x64xf32>
    %c0_66 = arith.constant 0 : index
    %c0_67 = arith.constant 0 : index
    %126 = vector.load %arg9[%c0_66, %c0_67] : memref<8x64xf32, #tpu.memory_space<vmem>>, vector<8x64xf32>
    %127 = arith.mulf %122, %126 : vector<8x64xf32>
    %128 = arith.mulf %121, %123 : vector<8x64xf32>
    %129 = arith.addf %127, %128 : vector<8x64xf32>
    %130 = math.tanh %129 : vector<8x64xf32>
    %131 = arith.mulf %124, %130 : vector<8x64xf32>
    %132 = arith.index_cast %c1_i32_50 : i32 to index
    %c0_68 = arith.constant 0 : index
    %c0_69 = arith.constant 0 : index
    %133 = vector.load %arg12[%132, %c0_68, %c0_69] : memref<8x8x64xf32, #tpu.memory_space<vmem>>, vector<1x8x64xf32>
    %134 = vector.shape_cast %133 : vector<1x8x64xf32> to vector<8x64xf32>
    %135 = arith.subf %131, %125 : vector<8x64xf32>
    %136 = arith.mulf %134, %135 : vector<8x64xf32>
    %137 = arith.addf %125, %136 : vector<8x64xf32>
    %138 = arith.subf %129, %126 : vector<8x64xf32>
    %139 = arith.mulf %134, %138 : vector<8x64xf32>
    %140 = arith.addf %126, %139 : vector<8x64xf32>
    %c0_70 = arith.constant 0 : index
    %c0_71 = arith.constant 0 : index
    %141 = vector.load %arg9[%c0_70, %c0_71] : memref<8x64xf32, #tpu.memory_space<vmem>>, vector<8x64xf32>
    tpu.vector_store %arg9[%c0_70, %c0_71], %140 {strides = array<i32>} : memref<8x64xf32, #tpu.memory_space<vmem>>, vector<8x64xf32>,
    %c0_72 = arith.constant 0 : index
    %c0_73 = arith.constant 0 : index
    %142 = vector.load %arg8[%c0_72, %c0_73] : memref<8x64xf32, #tpu.memory_space<vmem>>, vector<8x64xf32>
    tpu.vector_store %arg8[%c0_72, %c0_73], %137 {strides = array<i32>} : memref<8x64xf32, #tpu.memory_space<vmem>>, vector<8x64xf32>,
    %143 = arith.truncf %137 : vector<8x64xf32> to vector<8x64xbf16>
    %c0_74 = arith.constant 0 : index
    %c0_75 = arith.constant 0 : index
    %144 = vector.load %arg10[%c0_74, %c0_75] : memref<8x64xbf16, #tpu.memory_space<vmem>>, vector<8x64xbf16>
    tpu.vector_store %arg10[%c0_74, %c0_75], %143 {strides = array<i32>} : memref<8x64xbf16, #tpu.memory_space<vmem>>, vector<8x64xbf16>,
    %c2_i32 = arith.constant 2 : i32
    %c8_i32_76 = arith.constant 8 : i32
    %145 = arith.muli %c2_i32, %c8_i32_76 : i32
    %146 = tpu.assume_multiple %145, 8 : i32
    %c7_i32_77 = arith.constant 7 : i32
    %147 = arith.subi %c7_i32_77, %c2_i32 : i32
    %c8_i32_78 = arith.constant 8 : i32
    %148 = arith.muli %147, %c8_i32_78 : i32
    %149 = tpu.assume_multiple %148, 8 : i32
    %150 = arith.index_cast %146 : i32 to index
    %c0_79 = arith.constant 0 : index
    %151 = vector.load %arg11[%150, %c0_79] : memref<64x256xf32, #tpu.memory_space<vmem>>, vector<8x256xf32>
    %152 = arith.index_cast %149 : i32 to index
    %c0_80 = arith.constant 0 : index
    %153 = vector.load %arg11[%152, %c0_80] : memref<64x256xf32, #tpu.memory_space<vmem>>, vector<8x256xf32>
    %154 = arith.select %45, %151, %153 : vector<8x256xi1>, vector<8x256xf32>
    %c0_81 = arith.constant 0 : index
    %c0_82 = arith.constant 0 : index
    %155 = vector.load %arg10[%c0_81, %c0_82] : memref<8x64xbf16, #tpu.memory_space<vmem>>, vector<8x64xbf16>
    %c0_83 = arith.constant 0 : index
    %c0_84 = arith.constant 0 : index
    %156 = vector.load %arg4[%c0_83, %c0_84] : memref<64x256xbf16, #tpu.memory_space<vmem>>, vector<64x256xbf16>
    %cst_85 = arith.constant dense<0.000000e+00> : vector<8x256xf32>
    %157 = tpu.matmul %155, %156, %cst_85 {dimension_numbers = #tpu.dot_dimension_numbers<[1], [0], [0], [1], [0, 0, 1, 1], [], []>} : vector<8x64xbf16>, vector<64x256xbf16>, vector<8x256xf32> -> vector<8x256xf32>
    %158 = arith.addf %154, %157 : vector<8x256xf32>
    %cst_86 = arith.constant 5.000000e-01 : f32
    %159 = vector.broadcast %cst_86 : f32 to vector<8x256xf32>
    %160 = arith.mulf %159, %158 : vector<8x256xf32>
    %161 = arith.select %50, %158, %160 : vector<8x256xi1>, vector<8x256xf32>
    %162 = math.tanh %161 : vector<8x256xf32>
    %cst_87 = arith.constant 5.000000e-01 : f32
    %163 = vector.broadcast %cst_87 : f32 to vector<8x256xf32>
    %164 = arith.mulf %163, %162 : vector<8x256xf32>
    %cst_88 = arith.constant 5.000000e-01 : f32
    %165 = vector.broadcast %cst_88 : f32 to vector<8x256xf32>
    %166 = arith.addf %164, %165 : vector<8x256xf32>
    %167 = arith.select %50, %162, %166 : vector<8x256xi1>, vector<8x256xf32>
    %168 = vector.extract_strided_slice %167 {offsets = [0, 0], sizes = [8, 64], strides = [1, 1]} : vector<8x256xf32> to vector<8x64xf32>
    %169 = vector.extract_strided_slice %167 {offsets = [0, 64], sizes = [8, 64], strides = [1, 1]} : vector<8x256xf32> to vector<8x64xf32>
    %170 = vector.extract_strided_slice %167 {offsets = [0, 128], sizes = [8, 64], strides = [1, 1]} : vector<8x256xf32> to vector<8x64xf32>
    %171 = vector.extract_strided_slice %167 {offsets = [0, 192], sizes = [8, 64], strides = [1, 1]} : vector<8x256xf32> to vector<8x64xf32>
    %c0_89 = arith.constant 0 : index
    %c0_90 = arith.constant 0 : index
    %172 = vector.load %arg8[%c0_89, %c0_90] : memref<8x64xf32, #tpu.memory_space<vmem>>, vector<8x64xf32>
    %c0_91 = arith.constant 0 : index
    %c0_92 = arith.constant 0 : index
    %173 = vector.load %arg9[%c0_91, %c0_92] : memref<8x64xf32, #tpu.memory_space<vmem>>, vector<8x64xf32>
    %174 = arith.mulf %169, %173 : vector<8x64xf32>
    %175 = arith.mulf %168, %170 : vector<8x64xf32>
    %176 = arith.addf %174, %175 : vector<8x64xf32>
    %177 = math.tanh %176 : vector<8x64xf32>
    %178 = arith.mulf %171, %177 : vector<8x64xf32>
    %179 = arith.index_cast %c2_i32 : i32 to index
    %c0_93 = arith.constant 0 : index
    %c0_94 = arith.constant 0 : index
    %180 = vector.load %arg12[%179, %c0_93, %c0_94] : memref<8x8x64xf32, #tpu.memory_space<vmem>>, vector<1x8x64xf32>
    %181 = vector.shape_cast %180 : vector<1x8x64xf32> to vector<8x64xf32>
    %182 = arith.subf %178, %172 : vector<8x64xf32>
    %183 = arith.mulf %181, %182 : vector<8x64xf32>
    %184 = arith.addf %172, %183 : vector<8x64xf32>
    %185 = arith.subf %176, %173 : vector<8x64xf32>
    %186 = arith.mulf %181, %185 : vector<8x64xf32>
    %187 = arith.addf %173, %186 : vector<8x64xf32>
    %c0_95 = arith.constant 0 : index
    %c0_96 = arith.constant 0 : index
    %188 = vector.load %arg9[%c0_95, %c0_96] : memref<8x64xf32, #tpu.memory_space<vmem>>, vector<8x64xf32>
    tpu.vector_store %arg9[%c0_95, %c0_96], %187 {strides = array<i32>} : memref<8x64xf32, #tpu.memory_space<vmem>>, vector<8x64xf32>,
    %c0_97 = arith.constant 0 : index
    %c0_98 = arith.constant 0 : index
    %189 = vector.load %arg8[%c0_97, %c0_98] : memref<8x64xf32, #tpu.memory_space<vmem>>, vector<8x64xf32>
    tpu.vector_store %arg8[%c0_97, %c0_98], %184 {strides = array<i32>} : memref<8x64xf32, #tpu.memory_space<vmem>>, vector<8x64xf32>,
    %190 = arith.truncf %184 : vector<8x64xf32> to vector<8x64xbf16>
    %c0_99 = arith.constant 0 : index
    %c0_100 = arith.constant 0 : index
    %191 = vector.load %arg10[%c0_99, %c0_100] : memref<8x64xbf16, #tpu.memory_space<vmem>>, vector<8x64xbf16>
    tpu.vector_store %arg10[%c0_99, %c0_100], %190 {strides = array<i32>} : memref<8x64xbf16, #tpu.memory_space<vmem>>, vector<8x64xbf16>,
    %c3_i32 = arith.constant 3 : i32
    %c8_i32_101 = arith.constant 8 : i32
    %192 = arith.muli %c3_i32, %c8_i32_101 : i32
    %193 = tpu.assume_multiple %192, 8 : i32
    %c7_i32_102 = arith.constant 7 : i32
    %194 = arith.subi %c7_i32_102, %c3_i32 : i32
    %c8_i32_103 = arith.constant 8 : i32
    %195 = arith.muli %194, %c8_i32_103 : i32
    %196 = tpu.assume_multiple %195, 8 : i32
    %197 = arith.index_cast %193 : i32 to index
    %c0_104 = arith.constant 0 : index
    %198 = vector.load %arg11[%197, %c0_104] : memref<64x256xf32, #tpu.memory_space<vmem>>, vector<8x256xf32>
    %199 = arith.index_cast %196 : i32 to index
    %c0_105 = arith.constant 0 : index
    %200 = vector.load %arg11[%199, %c0_105] : memref<64x256xf32, #tpu.memory_space<vmem>>, vector<8x256xf32>
    %201 = arith.select %45, %198, %200 : vector<8x256xi1>, vector<8x256xf32>
    %c0_106 = arith.constant 0 : index
    %c0_107 = arith.constant 0 : index
    %202 = vector.load %arg10[%c0_106, %c0_107] : memref<8x64xbf16, #tpu.memory_space<vmem>>, vector<8x64xbf16>
    %c0_108 = arith.constant 0 : index
    %c0_109 = arith.constant 0 : index
    %203 = vector.load %arg4[%c0_108, %c0_109] : memref<64x256xbf16, #tpu.memory_space<vmem>>, vector<64x256xbf16>
    %cst_110 = arith.constant dense<0.000000e+00> : vector<8x256xf32>
    %204 = tpu.matmul %202, %203, %cst_110 {dimension_numbers = #tpu.dot_dimension_numbers<[1], [0], [0], [1], [0, 0, 1, 1], [], []>} : vector<8x64xbf16>, vector<64x256xbf16>, vector<8x256xf32> -> vector<8x256xf32>
    %205 = arith.addf %201, %204 : vector<8x256xf32>
    %cst_111 = arith.constant 5.000000e-01 : f32
    %206 = vector.broadcast %cst_111 : f32 to vector<8x256xf32>
    %207 = arith.mulf %206, %205 : vector<8x256xf32>
    %208 = arith.select %50, %205, %207 : vector<8x256xi1>, vector<8x256xf32>
    %209 = math.tanh %208 : vector<8x256xf32>
    %cst_112 = arith.constant 5.000000e-01 : f32
    %210 = vector.broadcast %cst_112 : f32 to vector<8x256xf32>
    %211 = arith.mulf %210, %209 : vector<8x256xf32>
    %cst_113 = arith.constant 5.000000e-01 : f32
    %212 = vector.broadcast %cst_113 : f32 to vector<8x256xf32>
    %213 = arith.addf %211, %212 : vector<8x256xf32>
    %214 = arith.select %50, %209, %213 : vector<8x256xi1>, vector<8x256xf32>
    %215 = vector.extract_strided_slice %214 {offsets = [0, 0], sizes = [8, 64], strides = [1, 1]} : vector<8x256xf32> to vector<8x64xf32>
    %216 = vector.extract_strided_slice %214 {offsets = [0, 64], sizes = [8, 64], strides = [1, 1]} : vector<8x256xf32> to vector<8x64xf32>
    %217 = vector.extract_strided_slice %214 {offsets = [0, 128], sizes = [8, 64], strides = [1, 1]} : vector<8x256xf32> to vector<8x64xf32>
    %218 = vector.extract_strided_slice %214 {offsets = [0, 192], sizes = [8, 64], strides = [1, 1]} : vector<8x256xf32> to vector<8x64xf32>
    %c0_114 = arith.constant 0 : index
    %c0_115 = arith.constant 0 : index
    %219 = vector.load %arg8[%c0_114, %c0_115] : memref<8x64xf32, #tpu.memory_space<vmem>>, vector<8x64xf32>
    %c0_116 = arith.constant 0 : index
    %c0_117 = arith.constant 0 : index
    %220 = vector.load %arg9[%c0_116, %c0_117] : memref<8x64xf32, #tpu.memory_space<vmem>>, vector<8x64xf32>
    %221 = arith.mulf %216, %220 : vector<8x64xf32>
    %222 = arith.mulf %215, %217 : vector<8x64xf32>
    %223 = arith.addf %221, %222 : vector<8x64xf32>
    %224 = math.tanh %223 : vector<8x64xf32>
    %225 = arith.mulf %218, %224 : vector<8x64xf32>
    %226 = arith.index_cast %c3_i32 : i32 to index
    %c0_118 = arith.constant 0 : index
    %c0_119 = arith.constant 0 : index
    %227 = vector.load %arg12[%226, %c0_118, %c0_119] : memref<8x8x64xf32, #tpu.memory_space<vmem>>, vector<1x8x64xf32>
    %228 = vector.shape_cast %227 : vector<1x8x64xf32> to vector<8x64xf32>
    %229 = arith.subf %225, %219 : vector<8x64xf32>
    %230 = arith.mulf %228, %229 : vector<8x64xf32>
    %231 = arith.addf %219, %230 : vector<8x64xf32>
    %232 = arith.subf %223, %220 : vector<8x64xf32>
    %233 = arith.mulf %228, %232 : vector<8x64xf32>
    %234 = arith.addf %220, %233 : vector<8x64xf32>
    %c0_120 = arith.constant 0 : index
    %c0_121 = arith.constant 0 : index
    %235 = vector.load %arg9[%c0_120, %c0_121] : memref<8x64xf32, #tpu.memory_space<vmem>>, vector<8x64xf32>
    tpu.vector_store %arg9[%c0_120, %c0_121], %234 {strides = array<i32>} : memref<8x64xf32, #tpu.memory_space<vmem>>, vector<8x64xf32>,
    %c0_122 = arith.constant 0 : index
    %c0_123 = arith.constant 0 : index
    %236 = vector.load %arg8[%c0_122, %c0_123] : memref<8x64xf32, #tpu.memory_space<vmem>>, vector<8x64xf32>
    tpu.vector_store %arg8[%c0_122, %c0_123], %231 {strides = array<i32>} : memref<8x64xf32, #tpu.memory_space<vmem>>, vector<8x64xf32>,
    %237 = arith.truncf %231 : vector<8x64xf32> to vector<8x64xbf16>
    %c0_124 = arith.constant 0 : index
    %c0_125 = arith.constant 0 : index
    %238 = vector.load %arg10[%c0_124, %c0_125] : memref<8x64xbf16, #tpu.memory_space<vmem>>, vector<8x64xbf16>
    tpu.vector_store %arg10[%c0_124, %c0_125], %237 {strides = array<i32>} : memref<8x64xbf16, #tpu.memory_space<vmem>>, vector<8x64xbf16>,
    %c4_i32 = arith.constant 4 : i32
    %c8_i32_126 = arith.constant 8 : i32
    %239 = arith.muli %c4_i32, %c8_i32_126 : i32
    %240 = tpu.assume_multiple %239, 8 : i32
    %c7_i32_127 = arith.constant 7 : i32
    %241 = arith.subi %c7_i32_127, %c4_i32 : i32
    %c8_i32_128 = arith.constant 8 : i32
    %242 = arith.muli %241, %c8_i32_128 : i32
    %243 = tpu.assume_multiple %242, 8 : i32
    %244 = arith.index_cast %240 : i32 to index
    %c0_129 = arith.constant 0 : index
    %245 = vector.load %arg11[%244, %c0_129] : memref<64x256xf32, #tpu.memory_space<vmem>>, vector<8x256xf32>
    %246 = arith.index_cast %243 : i32 to index
    %c0_130 = arith.constant 0 : index
    %247 = vector.load %arg11[%246, %c0_130] : memref<64x256xf32, #tpu.memory_space<vmem>>, vector<8x256xf32>
    %248 = arith.select %45, %245, %247 : vector<8x256xi1>, vector<8x256xf32>
    %c0_131 = arith.constant 0 : index
    %c0_132 = arith.constant 0 : index
    %249 = vector.load %arg10[%c0_131, %c0_132] : memref<8x64xbf16, #tpu.memory_space<vmem>>, vector<8x64xbf16>
    %c0_133 = arith.constant 0 : index
    %c0_134 = arith.constant 0 : index
    %250 = vector.load %arg4[%c0_133, %c0_134] : memref<64x256xbf16, #tpu.memory_space<vmem>>, vector<64x256xbf16>
    %cst_135 = arith.constant dense<0.000000e+00> : vector<8x256xf32>
    %251 = tpu.matmul %249, %250, %cst_135 {dimension_numbers = #tpu.dot_dimension_numbers<[1], [0], [0], [1], [0, 0, 1, 1], [], []>} : vector<8x64xbf16>, vector<64x256xbf16>, vector<8x256xf32> -> vector<8x256xf32>
    %252 = arith.addf %248, %251 : vector<8x256xf32>
    %cst_136 = arith.constant 5.000000e-01 : f32
    %253 = vector.broadcast %cst_136 : f32 to vector<8x256xf32>
    %254 = arith.mulf %253, %252 : vector<8x256xf32>
    %255 = arith.select %50, %252, %254 : vector<8x256xi1>, vector<8x256xf32>
    %256 = math.tanh %255 : vector<8x256xf32>
    %cst_137 = arith.constant 5.000000e-01 : f32
    %257 = vector.broadcast %cst_137 : f32 to vector<8x256xf32>
    %258 = arith.mulf %257, %256 : vector<8x256xf32>
    %cst_138 = arith.constant 5.000000e-01 : f32
    %259 = vector.broadcast %cst_138 : f32 to vector<8x256xf32>
    %260 = arith.addf %258, %259 : vector<8x256xf32>
    %261 = arith.select %50, %256, %260 : vector<8x256xi1>, vector<8x256xf32>
    %262 = vector.extract_strided_slice %261 {offsets = [0, 0], sizes = [8, 64], strides = [1, 1]} : vector<8x256xf32> to vector<8x64xf32>
    %263 = vector.extract_strided_slice %261 {offsets = [0, 64], sizes = [8, 64], strides = [1, 1]} : vector<8x256xf32> to vector<8x64xf32>
    %264 = vector.extract_strided_slice %261 {offsets = [0, 128], sizes = [8, 64], strides = [1, 1]} : vector<8x256xf32> to vector<8x64xf32>
    %265 = vector.extract_strided_slice %261 {offsets = [0, 192], sizes = [8, 64], strides = [1, 1]} : vector<8x256xf32> to vector<8x64xf32>
    %c0_139 = arith.constant 0 : index
    %c0_140 = arith.constant 0 : index
    %266 = vector.load %arg8[%c0_139, %c0_140] : memref<8x64xf32, #tpu.memory_space<vmem>>, vector<8x64xf32>
    %c0_141 = arith.constant 0 : index
    %c0_142 = arith.constant 0 : index
    %267 = vector.load %arg9[%c0_141, %c0_142] : memref<8x64xf32, #tpu.memory_space<vmem>>, vector<8x64xf32>
    %268 = arith.mulf %263, %267 : vector<8x64xf32>
    %269 = arith.mulf %262, %264 : vector<8x64xf32>
    %270 = arith.addf %268, %269 : vector<8x64xf32>
    %271 = math.tanh %270 : vector<8x64xf32>
    %272 = arith.mulf %265, %271 : vector<8x64xf32>
    %273 = arith.index_cast %c4_i32 : i32 to index
    %c0_143 = arith.constant 0 : index
    %c0_144 = arith.constant 0 : index
    %274 = vector.load %arg12[%273, %c0_143, %c0_144] : memref<8x8x64xf32, #tpu.memory_space<vmem>>, vector<1x8x64xf32>
    %275 = vector.shape_cast %274 : vector<1x8x64xf32> to vector<8x64xf32>
    %276 = arith.subf %272, %266 : vector<8x64xf32>
    %277 = arith.mulf %275, %276 : vector<8x64xf32>
    %278 = arith.addf %266, %277 : vector<8x64xf32>
    %279 = arith.subf %270, %267 : vector<8x64xf32>
    %280 = arith.mulf %275, %279 : vector<8x64xf32>
    %281 = arith.addf %267, %280 : vector<8x64xf32>
    %c0_145 = arith.constant 0 : index
    %c0_146 = arith.constant 0 : index
    %282 = vector.load %arg9[%c0_145, %c0_146] : memref<8x64xf32, #tpu.memory_space<vmem>>, vector<8x64xf32>
    tpu.vector_store %arg9[%c0_145, %c0_146], %281 {strides = array<i32>} : memref<8x64xf32, #tpu.memory_space<vmem>>, vector<8x64xf32>,
    %c0_147 = arith.constant 0 : index
    %c0_148 = arith.constant 0 : index
    %283 = vector.load %arg8[%c0_147, %c0_148] : memref<8x64xf32, #tpu.memory_space<vmem>>, vector<8x64xf32>
    tpu.vector_store %arg8[%c0_147, %c0_148], %278 {strides = array<i32>} : memref<8x64xf32, #tpu.memory_space<vmem>>, vector<8x64xf32>,
    %284 = arith.truncf %278 : vector<8x64xf32> to vector<8x64xbf16>
    %c0_149 = arith.constant 0 : index
    %c0_150 = arith.constant 0 : index
    %285 = vector.load %arg10[%c0_149, %c0_150] : memref<8x64xbf16, #tpu.memory_space<vmem>>, vector<8x64xbf16>
    tpu.vector_store %arg10[%c0_149, %c0_150], %284 {strides = array<i32>} : memref<8x64xbf16, #tpu.memory_space<vmem>>, vector<8x64xbf16>,
    %c5_i32 = arith.constant 5 : i32
    %c8_i32_151 = arith.constant 8 : i32
    %286 = arith.muli %c5_i32, %c8_i32_151 : i32
    %287 = tpu.assume_multiple %286, 8 : i32
    %c7_i32_152 = arith.constant 7 : i32
    %288 = arith.subi %c7_i32_152, %c5_i32 : i32
    %c8_i32_153 = arith.constant 8 : i32
    %289 = arith.muli %288, %c8_i32_153 : i32
    %290 = tpu.assume_multiple %289, 8 : i32
    %291 = arith.index_cast %287 : i32 to index
    %c0_154 = arith.constant 0 : index
    %292 = vector.load %arg11[%291, %c0_154] : memref<64x256xf32, #tpu.memory_space<vmem>>, vector<8x256xf32>
    %293 = arith.index_cast %290 : i32 to index
    %c0_155 = arith.constant 0 : index
    %294 = vector.load %arg11[%293, %c0_155] : memref<64x256xf32, #tpu.memory_space<vmem>>, vector<8x256xf32>
    %295 = arith.select %45, %292, %294 : vector<8x256xi1>, vector<8x256xf32>
    %c0_156 = arith.constant 0 : index
    %c0_157 = arith.constant 0 : index
    %296 = vector.load %arg10[%c0_156, %c0_157] : memref<8x64xbf16, #tpu.memory_space<vmem>>, vector<8x64xbf16>
    %c0_158 = arith.constant 0 : index
    %c0_159 = arith.constant 0 : index
    %297 = vector.load %arg4[%c0_158, %c0_159] : memref<64x256xbf16, #tpu.memory_space<vmem>>, vector<64x256xbf16>
    %cst_160 = arith.constant dense<0.000000e+00> : vector<8x256xf32>
    %298 = tpu.matmul %296, %297, %cst_160 {dimension_numbers = #tpu.dot_dimension_numbers<[1], [0], [0], [1], [0, 0, 1, 1], [], []>} : vector<8x64xbf16>, vector<64x256xbf16>, vector<8x256xf32> -> vector<8x256xf32>
    %299 = arith.addf %295, %298 : vector<8x256xf32>
    %cst_161 = arith.constant 5.000000e-01 : f32
    %300 = vector.broadcast %cst_161 : f32 to vector<8x256xf32>
    %301 = arith.mulf %300, %299 : vector<8x256xf32>
    %302 = arith.select %50, %299, %301 : vector<8x256xi1>, vector<8x256xf32>
    %303 = math.tanh %302 : vector<8x256xf32>
    %cst_162 = arith.constant 5.000000e-01 : f32
    %304 = vector.broadcast %cst_162 : f32 to vector<8x256xf32>
    %305 = arith.mulf %304, %303 : vector<8x256xf32>
    %cst_163 = arith.constant 5.000000e-01 : f32
    %306 = vector.broadcast %cst_163 : f32 to vector<8x256xf32>
    %307 = arith.addf %305, %306 : vector<8x256xf32>
    %308 = arith.select %50, %303, %307 : vector<8x256xi1>, vector<8x256xf32>
    %309 = vector.extract_strided_slice %308 {offsets = [0, 0], sizes = [8, 64], strides = [1, 1]} : vector<8x256xf32> to vector<8x64xf32>
    %310 = vector.extract_strided_slice %308 {offsets = [0, 64], sizes = [8, 64], strides = [1, 1]} : vector<8x256xf32> to vector<8x64xf32>
    %311 = vector.extract_strided_slice %308 {offsets = [0, 128], sizes = [8, 64], strides = [1, 1]} : vector<8x256xf32> to vector<8x64xf32>
    %312 = vector.extract_strided_slice %308 {offsets = [0, 192], sizes = [8, 64], strides = [1, 1]} : vector<8x256xf32> to vector<8x64xf32>
    %c0_164 = arith.constant 0 : index
    %c0_165 = arith.constant 0 : index
    %313 = vector.load %arg8[%c0_164, %c0_165] : memref<8x64xf32, #tpu.memory_space<vmem>>, vector<8x64xf32>
    %c0_166 = arith.constant 0 : index
    %c0_167 = arith.constant 0 : index
    %314 = vector.load %arg9[%c0_166, %c0_167] : memref<8x64xf32, #tpu.memory_space<vmem>>, vector<8x64xf32>
    %315 = arith.mulf %310, %314 : vector<8x64xf32>
    %316 = arith.mulf %309, %311 : vector<8x64xf32>
    %317 = arith.addf %315, %316 : vector<8x64xf32>
    %318 = math.tanh %317 : vector<8x64xf32>
    %319 = arith.mulf %312, %318 : vector<8x64xf32>
    %320 = arith.index_cast %c5_i32 : i32 to index
    %c0_168 = arith.constant 0 : index
    %c0_169 = arith.constant 0 : index
    %321 = vector.load %arg12[%320, %c0_168, %c0_169] : memref<8x8x64xf32, #tpu.memory_space<vmem>>, vector<1x8x64xf32>
    %322 = vector.shape_cast %321 : vector<1x8x64xf32> to vector<8x64xf32>
    %323 = arith.subf %319, %313 : vector<8x64xf32>
    %324 = arith.mulf %322, %323 : vector<8x64xf32>
    %325 = arith.addf %313, %324 : vector<8x64xf32>
    %326 = arith.subf %317, %314 : vector<8x64xf32>
    %327 = arith.mulf %322, %326 : vector<8x64xf32>
    %328 = arith.addf %314, %327 : vector<8x64xf32>
    %c0_170 = arith.constant 0 : index
    %c0_171 = arith.constant 0 : index
    %329 = vector.load %arg9[%c0_170, %c0_171] : memref<8x64xf32, #tpu.memory_space<vmem>>, vector<8x64xf32>
    tpu.vector_store %arg9[%c0_170, %c0_171], %328 {strides = array<i32>} : memref<8x64xf32, #tpu.memory_space<vmem>>, vector<8x64xf32>,
    %c0_172 = arith.constant 0 : index
    %c0_173 = arith.constant 0 : index
    %330 = vector.load %arg8[%c0_172, %c0_173] : memref<8x64xf32, #tpu.memory_space<vmem>>, vector<8x64xf32>
    tpu.vector_store %arg8[%c0_172, %c0_173], %325 {strides = array<i32>} : memref<8x64xf32, #tpu.memory_space<vmem>>, vector<8x64xf32>,
    %331 = arith.truncf %325 : vector<8x64xf32> to vector<8x64xbf16>
    %c0_174 = arith.constant 0 : index
    %c0_175 = arith.constant 0 : index
    %332 = vector.load %arg10[%c0_174, %c0_175] : memref<8x64xbf16, #tpu.memory_space<vmem>>, vector<8x64xbf16>
    tpu.vector_store %arg10[%c0_174, %c0_175], %331 {strides = array<i32>} : memref<8x64xbf16, #tpu.memory_space<vmem>>, vector<8x64xbf16>,
    %c6_i32 = arith.constant 6 : i32
    %c8_i32_176 = arith.constant 8 : i32
    %333 = arith.muli %c6_i32, %c8_i32_176 : i32
    %334 = tpu.assume_multiple %333, 8 : i32
    %c7_i32_177 = arith.constant 7 : i32
    %335 = arith.subi %c7_i32_177, %c6_i32 : i32
    %c8_i32_178 = arith.constant 8 : i32
    %336 = arith.muli %335, %c8_i32_178 : i32
    %337 = tpu.assume_multiple %336, 8 : i32
    %338 = arith.index_cast %334 : i32 to index
    %c0_179 = arith.constant 0 : index
    %339 = vector.load %arg11[%338, %c0_179] : memref<64x256xf32, #tpu.memory_space<vmem>>, vector<8x256xf32>
    %340 = arith.index_cast %337 : i32 to index
    %c0_180 = arith.constant 0 : index
    %341 = vector.load %arg11[%340, %c0_180] : memref<64x256xf32, #tpu.memory_space<vmem>>, vector<8x256xf32>
    %342 = arith.select %45, %339, %341 : vector<8x256xi1>, vector<8x256xf32>
    %c0_181 = arith.constant 0 : index
    %c0_182 = arith.constant 0 : index
    %343 = vector.load %arg10[%c0_181, %c0_182] : memref<8x64xbf16, #tpu.memory_space<vmem>>, vector<8x64xbf16>
    %c0_183 = arith.constant 0 : index
    %c0_184 = arith.constant 0 : index
    %344 = vector.load %arg4[%c0_183, %c0_184] : memref<64x256xbf16, #tpu.memory_space<vmem>>, vector<64x256xbf16>
    %cst_185 = arith.constant dense<0.000000e+00> : vector<8x256xf32>
    %345 = tpu.matmul %343, %344, %cst_185 {dimension_numbers = #tpu.dot_dimension_numbers<[1], [0], [0], [1], [0, 0, 1, 1], [], []>} : vector<8x64xbf16>, vector<64x256xbf16>, vector<8x256xf32> -> vector<8x256xf32>
    %346 = arith.addf %342, %345 : vector<8x256xf32>
    %cst_186 = arith.constant 5.000000e-01 : f32
    %347 = vector.broadcast %cst_186 : f32 to vector<8x256xf32>
    %348 = arith.mulf %347, %346 : vector<8x256xf32>
    %349 = arith.select %50, %346, %348 : vector<8x256xi1>, vector<8x256xf32>
    %350 = math.tanh %349 : vector<8x256xf32>
    %cst_187 = arith.constant 5.000000e-01 : f32
    %351 = vector.broadcast %cst_187 : f32 to vector<8x256xf32>
    %352 = arith.mulf %351, %350 : vector<8x256xf32>
    %cst_188 = arith.constant 5.000000e-01 : f32
    %353 = vector.broadcast %cst_188 : f32 to vector<8x256xf32>
    %354 = arith.addf %352, %353 : vector<8x256xf32>
    %355 = arith.select %50, %350, %354 : vector<8x256xi1>, vector<8x256xf32>
    %356 = vector.extract_strided_slice %355 {offsets = [0, 0], sizes = [8, 64], strides = [1, 1]} : vector<8x256xf32> to vector<8x64xf32>
    %357 = vector.extract_strided_slice %355 {offsets = [0, 64], sizes = [8, 64], strides = [1, 1]} : vector<8x256xf32> to vector<8x64xf32>
    %358 = vector.extract_strided_slice %355 {offsets = [0, 128], sizes = [8, 64], strides = [1, 1]} : vector<8x256xf32> to vector<8x64xf32>
    %359 = vector.extract_strided_slice %355 {offsets = [0, 192], sizes = [8, 64], strides = [1, 1]} : vector<8x256xf32> to vector<8x64xf32>
    %c0_189 = arith.constant 0 : index
    %c0_190 = arith.constant 0 : index
    %360 = vector.load %arg8[%c0_189, %c0_190] : memref<8x64xf32, #tpu.memory_space<vmem>>, vector<8x64xf32>
    %c0_191 = arith.constant 0 : index
    %c0_192 = arith.constant 0 : index
    %361 = vector.load %arg9[%c0_191, %c0_192] : memref<8x64xf32, #tpu.memory_space<vmem>>, vector<8x64xf32>
    %362 = arith.mulf %357, %361 : vector<8x64xf32>
    %363 = arith.mulf %356, %358 : vector<8x64xf32>
    %364 = arith.addf %362, %363 : vector<8x64xf32>
    %365 = math.tanh %364 : vector<8x64xf32>
    %366 = arith.mulf %359, %365 : vector<8x64xf32>
    %367 = arith.index_cast %c6_i32 : i32 to index
    %c0_193 = arith.constant 0 : index
    %c0_194 = arith.constant 0 : index
    %368 = vector.load %arg12[%367, %c0_193, %c0_194] : memref<8x8x64xf32, #tpu.memory_space<vmem>>, vector<1x8x64xf32>
    %369 = vector.shape_cast %368 : vector<1x8x64xf32> to vector<8x64xf32>
    %370 = arith.subf %366, %360 : vector<8x64xf32>
    %371 = arith.mulf %369, %370 : vector<8x64xf32>
    %372 = arith.addf %360, %371 : vector<8x64xf32>
    %373 = arith.subf %364, %361 : vector<8x64xf32>
    %374 = arith.mulf %369, %373 : vector<8x64xf32>
    %375 = arith.addf %361, %374 : vector<8x64xf32>
    %c0_195 = arith.constant 0 : index
    %c0_196 = arith.constant 0 : index
    %376 = vector.load %arg9[%c0_195, %c0_196] : memref<8x64xf32, #tpu.memory_space<vmem>>, vector<8x64xf32>
    tpu.vector_store %arg9[%c0_195, %c0_196], %375 {strides = array<i32>} : memref<8x64xf32, #tpu.memory_space<vmem>>, vector<8x64xf32>,
    %c0_197 = arith.constant 0 : index
    %c0_198 = arith.constant 0 : index
    %377 = vector.load %arg8[%c0_197, %c0_198] : memref<8x64xf32, #tpu.memory_space<vmem>>, vector<8x64xf32>
    tpu.vector_store %arg8[%c0_197, %c0_198], %372 {strides = array<i32>} : memref<8x64xf32, #tpu.memory_space<vmem>>, vector<8x64xf32>,
    %378 = arith.truncf %372 : vector<8x64xf32> to vector<8x64xbf16>
    %c0_199 = arith.constant 0 : index
    %c0_200 = arith.constant 0 : index
    %379 = vector.load %arg10[%c0_199, %c0_200] : memref<8x64xbf16, #tpu.memory_space<vmem>>, vector<8x64xbf16>
    tpu.vector_store %arg10[%c0_199, %c0_200], %378 {strides = array<i32>} : memref<8x64xbf16, #tpu.memory_space<vmem>>, vector<8x64xbf16>,
    %c7_i32_201 = arith.constant 7 : i32
    %c8_i32_202 = arith.constant 8 : i32
    %380 = arith.muli %c7_i32_201, %c8_i32_202 : i32
    %381 = tpu.assume_multiple %380, 8 : i32
    %c7_i32_203 = arith.constant 7 : i32
    %382 = arith.subi %c7_i32_203, %c7_i32_201 : i32
    %c8_i32_204 = arith.constant 8 : i32
    %383 = arith.muli %382, %c8_i32_204 : i32
    %384 = tpu.assume_multiple %383, 8 : i32
    %385 = arith.index_cast %381 : i32 to index
    %c0_205 = arith.constant 0 : index
    %386 = vector.load %arg11[%385, %c0_205] : memref<64x256xf32, #tpu.memory_space<vmem>>, vector<8x256xf32>
    %387 = arith.index_cast %384 : i32 to index
    %c0_206 = arith.constant 0 : index
    %388 = vector.load %arg11[%387, %c0_206] : memref<64x256xf32, #tpu.memory_space<vmem>>, vector<8x256xf32>
    %389 = arith.select %45, %386, %388 : vector<8x256xi1>, vector<8x256xf32>
    %c0_207 = arith.constant 0 : index
    %c0_208 = arith.constant 0 : index
    %390 = vector.load %arg10[%c0_207, %c0_208] : memref<8x64xbf16, #tpu.memory_space<vmem>>, vector<8x64xbf16>
    %c0_209 = arith.constant 0 : index
    %c0_210 = arith.constant 0 : index
    %391 = vector.load %arg4[%c0_209, %c0_210] : memref<64x256xbf16, #tpu.memory_space<vmem>>, vector<64x256xbf16>
    %cst_211 = arith.constant dense<0.000000e+00> : vector<8x256xf32>
    %392 = tpu.matmul %390, %391, %cst_211 {dimension_numbers = #tpu.dot_dimension_numbers<[1], [0], [0], [1], [0, 0, 1, 1], [], []>} : vector<8x64xbf16>, vector<64x256xbf16>, vector<8x256xf32> -> vector<8x256xf32>
    %393 = arith.addf %389, %392 : vector<8x256xf32>
    %cst_212 = arith.constant 5.000000e-01 : f32
    %394 = vector.broadcast %cst_212 : f32 to vector<8x256xf32>
    %395 = arith.mulf %394, %393 : vector<8x256xf32>
    %396 = arith.select %50, %393, %395 : vector<8x256xi1>, vector<8x256xf32>
    %397 = math.tanh %396 : vector<8x256xf32>
    %cst_213 = arith.constant 5.000000e-01 : f32
    %398 = vector.broadcast %cst_213 : f32 to vector<8x256xf32>
    %399 = arith.mulf %398, %397 : vector<8x256xf32>
    %cst_214 = arith.constant 5.000000e-01 : f32
    %400 = vector.broadcast %cst_214 : f32 to vector<8x256xf32>
    %401 = arith.addf %399, %400 : vector<8x256xf32>
    %402 = arith.select %50, %397, %401 : vector<8x256xi1>, vector<8x256xf32>
    %403 = vector.extract_strided_slice %402 {offsets = [0, 0], sizes = [8, 64], strides = [1, 1]} : vector<8x256xf32> to vector<8x64xf32>
    %404 = vector.extract_strided_slice %402 {offsets = [0, 64], sizes = [8, 64], strides = [1, 1]} : vector<8x256xf32> to vector<8x64xf32>
    %405 = vector.extract_strided_slice %402 {offsets = [0, 128], sizes = [8, 64], strides = [1, 1]} : vector<8x256xf32> to vector<8x64xf32>
    %406 = vector.extract_strided_slice %402 {offsets = [0, 192], sizes = [8, 64], strides = [1, 1]} : vector<8x256xf32> to vector<8x64xf32>
    %c0_215 = arith.constant 0 : index
    %c0_216 = arith.constant 0 : index
    %407 = vector.load %arg8[%c0_215, %c0_216] : memref<8x64xf32, #tpu.memory_space<vmem>>, vector<8x64xf32>
    %c0_217 = arith.constant 0 : index
    %c0_218 = arith.constant 0 : index
    %408 = vector.load %arg9[%c0_217, %c0_218] : memref<8x64xf32, #tpu.memory_space<vmem>>, vector<8x64xf32>
    %409 = arith.mulf %404, %408 : vector<8x64xf32>
    %410 = arith.mulf %403, %405 : vector<8x64xf32>
    %411 = arith.addf %409, %410 : vector<8x64xf32>
    %412 = math.tanh %411 : vector<8x64xf32>
    %413 = arith.mulf %406, %412 : vector<8x64xf32>
    %414 = arith.index_cast %c7_i32_201 : i32 to index
    %c0_219 = arith.constant 0 : index
    %c0_220 = arith.constant 0 : index
    %415 = vector.load %arg12[%414, %c0_219, %c0_220] : memref<8x8x64xf32, #tpu.memory_space<vmem>>, vector<1x8x64xf32>
    %416 = vector.shape_cast %415 : vector<1x8x64xf32> to vector<8x64xf32>
    %417 = arith.subf %413, %407 : vector<8x64xf32>
    %418 = arith.mulf %416, %417 : vector<8x64xf32>
    %419 = arith.addf %407, %418 : vector<8x64xf32>
    %420 = arith.subf %411, %408 : vector<8x64xf32>
    %421 = arith.mulf %416, %420 : vector<8x64xf32>
    %422 = arith.addf %408, %421 : vector<8x64xf32>
    %c0_221 = arith.constant 0 : index
    %c0_222 = arith.constant 0 : index
    %423 = vector.load %arg9[%c0_221, %c0_222] : memref<8x64xf32, #tpu.memory_space<vmem>>, vector<8x64xf32>
    tpu.vector_store %arg9[%c0_221, %c0_222], %422 {strides = array<i32>} : memref<8x64xf32, #tpu.memory_space<vmem>>, vector<8x64xf32>,
    %c0_223 = arith.constant 0 : index
    %c0_224 = arith.constant 0 : index
    %424 = vector.load %arg8[%c0_223, %c0_224] : memref<8x64xf32, #tpu.memory_space<vmem>>, vector<8x64xf32>
    tpu.vector_store %arg8[%c0_223, %c0_224], %419 {strides = array<i32>} : memref<8x64xf32, #tpu.memory_space<vmem>>, vector<8x64xf32>,
    %425 = arith.truncf %419 : vector<8x64xf32> to vector<8x64xbf16>
    %c0_225 = arith.constant 0 : index
    %c0_226 = arith.constant 0 : index
    %426 = vector.load %arg10[%c0_225, %c0_226] : memref<8x64xbf16, #tpu.memory_space<vmem>>, vector<8x64xbf16>
    tpu.vector_store %arg10[%c0_225, %c0_226], %425 {strides = array<i32>} : memref<8x64xbf16, #tpu.memory_space<vmem>>, vector<8x64xbf16>,
    %c8_i32_227 = arith.constant 8 : i32
    %c0_228 = arith.constant 0 : index
    %c0_229 = arith.constant 0 : index
    %427 = vector.load %arg10[%c0_228, %c0_229] : memref<8x64xbf16, #tpu.memory_space<vmem>>, vector<8x64xbf16>
    %c0_230 = arith.constant 0 : index
    %c0_231 = arith.constant 0 : index
    %428 = vector.load %arg6[%c0_230, %c0_231] : memref<64x128xbf16, #tpu.memory_space<vmem>>, vector<64x128xbf16>
    %cst_232 = arith.constant dense<0.000000e+00> : vector<8x128xf32>
    %429 = tpu.matmul %427, %428, %cst_232 {dimension_numbers = #tpu.dot_dimension_numbers<[1], [0], [0], [1], [0, 0, 1, 1], [], []>} : vector<8x64xbf16>, vector<64x128xbf16>, vector<8x128xf32> -> vector<8x128xf32>
    %c0_233 = arith.constant 0 : index
    %c0_234 = arith.constant 0 : index
    %430 = vector.load %arg7[%c0_233, %c0_234] : memref<8x128xf32, #tpu.memory_space<vmem>>, vector<8x128xf32>
    tpu.vector_store %arg7[%c0_233, %c0_234], %429 {strides = array<i32>} : memref<8x128xf32, #tpu.memory_space<vmem>>, vector<8x128xf32>,
    return
  }
  func.func @transform_0(%arg0: i32) -> (i32, i32) {
    %c0_i32 = arith.constant 0 : i32
    %c0_i32_0 = arith.constant 0 : i32
    %c0_i32_1 = arith.constant 0 : i32
    return %c0_i32, %c0_i32_0 : i32, i32
  }
  func.func @transform_1(%arg0: i32) -> (i32, i32) {
    %c0_i32 = arith.constant 0 : i32
    %c0_i32_0 = arith.constant 0 : i32
    %c0_i32_1 = arith.constant 0 : i32
    return %c0_i32, %c0_i32_0 : i32, i32
  }
  func.func @transform_2(%arg0: i32) -> (i32, i32) {
    %c0_i32 = arith.constant 0 : i32
    %c0_i32_0 = arith.constant 0 : i32
    %c0_i32_1 = arith.constant 0 : i32
    return %c0_i32, %c0_i32_0 : i32, i32
  }
  func.func @transform_3(%arg0: i32) -> (i32, i32) {
    %c0_i32 = arith.constant 0 : i32
    %c0_i32_0 = arith.constant 0 : i32
    %c0_i32_1 = arith.constant 0 : i32
    return %c0_i32, %c0_i32_0 : i32, i32
  }
  func.func @transform_4(%arg0: i32) -> (i32, i32) {
    %c0_i32 = arith.constant 0 : i32
    %c0_i32_0 = arith.constant 0 : i32
    %c0_i32_1 = arith.constant 0 : i32
    return %c0_i32, %c0_i32_0 : i32, i32
  }
  func.func @transform_5(%arg0: i32) -> (i32, i32) {
    %c0_i32 = arith.constant 0 : i32
    %c0_i32_0 = arith.constant 0 : i32
    %c0_i32_1 = arith.constant 0 : i32
    return %c0_i32, %c0_i32_0 : i32, i32
  }
  func.func @transform_6(%arg0: i32) -> (i32, i32) {
    %c0_i32 = arith.constant 0 : i32
    %c0_i32_0 = arith.constant 0 : i32
    %c0_i32_1 = arith.constant 0 : i32
    return %c0_i32, %c0_i32_0 : i32, i32
  }
}

</mosaic_0001>

<llo_original>
// kernel: sentiment_net_forward.1
$region0: #{sentiment_net_forward.1}
  #allocation0 [shape = 'u32[]', space=smem, size = 0x4, offset = 0x4, fixed_abs, tag = 'smem constant byte address 0x4 - core index']
  #allocation1 [shape = 'u32[144,128]{1,0:T(1,128)}', space=vmem, size = 0x12000, scoped, tag = 'internal scratch']
  #allocation2 [shape = 'f32[8,64]{1,0:T(8,128)}', space=vmem, size = 0x1000, scoped, tag = 'scratch operand']
  #allocation3 [shape = 'f32[8,64]{1,0:T(8,128)}', space=vmem, size = 0x1000, scoped, tag = 'scratch operand']
  #allocation4 [shape = 'bf16[8,64]{1,0:T(8,128)(2,1)}', space=vmem, size = 0x800, scoped, tag = 'scratch operand']
  #allocation5 [shape = 'f32[64,256]{1,0:T(8,128)}', space=vmem, size = 0x10000, scoped, tag = 'scratch operand']
  #allocation6 [shape = 'f32[8,8,64]{2,1,0:T(8,128)}', space=vmem, size = 0x8000, scoped, tag = 'scratch operand']
  %s0 = inlined_call_operand.vmem [shape: bf16[64,32], index: 0, kind: input, shape index: {}]
  %s1 = inlined_call_operand.vmem [shape: s32[8,1], index: 1, kind: input, shape index: {}]
  %s2 = inlined_call_operand.vmem [shape: bf16[32,256], index: 2, kind: input, shape index: {}]
  %s3 = inlined_call_operand.vmem [shape: bf16[64,256], index: 3, kind: input, shape index: {}]
  %s4 = inlined_call_operand.vmem [shape: f32[1,256], index: 4, kind: input, shape index: {}]
  %s5 = inlined_call_operand.vmem [shape: bf16[64,128], index: 5, kind: input, shape index: {}]
  %s6 = inlined_call_operand.vmem [shape: f32[8,128], index: 6, kind: output, shape index: {}]
  %s7 = sld [smem:[#allocation0]]
  $region34: #{sentiment_net_forward.1} parent=0
    _
  %s9 = ssub.s32 1, %s7
  %s10 = scalar_select 0, %s9, %s7
  // Predicated region
  $region2: #{sentiment_net_forward.1} parent=0 // pred_check
    _
  $region3: #{sentiment_net_forward.1} parent=0 // pred_check_branch
    %12 = sbr.rel (0) target = $region5
  $region4: #{sentiment_net_forward.1} parent=0 // pred_region
    _
  $region5: #{sentiment_net_forward.1} parent=0 // pred_fallthru
    _
  // Predicated region
  $region6: #{sentiment_net_forward.1} parent=0 // pred_check
    _
  $region7: #{sentiment_net_forward.1} parent=0 // pred_check_branch
    %14 = sbr.rel (0) target = $region9
  $region8: #{sentiment_net_forward.1} parent=0 // pred_region
    _
  $region9: #{sentiment_net_forward.1} parent=0 // pred_fallthru
    _
  // Predicated region
  $region10: #{sentiment_net_forward.1} parent=0 // pred_check
    _
  $region11: #{sentiment_net_forward.1} parent=0 // pred_check_branch
    %16 = sbr.rel (0) target = $region13
  $region12: #{sentiment_net_forward.1} parent=0 // pred_region
    _
  $region13: #{sentiment_net_forward.1} parent=0 // pred_fallthru
    _
  // Predicated region
  $region14: #{sentiment_net_forward.1} parent=0 // pred_check
    _
  $region15: #{sentiment_net_forward.1} parent=0 // pred_check_branch
    %18 = sbr.rel (0) target = $region17
  $region16: #{sentiment_net_forward.1} parent=0 // pred_region
    _
  $region17: #{sentiment_net_forward.1} parent=0 // pred_fallthru
    _
  // Predicated region
  $region18: #{sentiment_net_forward.1} parent=0 // pred_check
    _
  $region19: #{sentiment_net_forward.1} parent=0 // pred_check_branch
    %20 = sbr.rel (0) target = $region21
  $region20: #{sentiment_net_forward.1} parent=0 // pred_region
    _
  $region21: #{sentiment_net_forward.1} parent=0 // pred_fallthru
    _
  // Predicated region
  $region22: #{sentiment_net_forward.1} parent=0 // pred_check
    _
  $region23: #{sentiment_net_forward.1} parent=0 // pred_check_branch
    %22 = sbr.rel (0) target = $region25
  $region24: #{sentiment_net_forward.1} parent=0 // pred_region
    _
  $region25: #{sentiment_net_forward.1} parent=0 // pred_fallthru
    _
  %v24 = vld [vmem:[%s0] sm:$0xf]
  %v25 = vld [vmem:[%s0 + $0x4] sm:$0xf]
  %v26 = vld [vmem:[%s0 + $0x8] sm:$0xf]
  %v27 = vld [vmem:[%s0 + $0xc] sm:$0xf]
  %v28 = vld [vmem:[%s0 + $0x10] sm:$0xf]
  %v29 = vld [vmem:[%s0 + $0x14] sm:$0xf]
  %v30 = vld [vmem:[%s0 + $0x18] sm:$0xf]
  %v31 = vld [vmem:[%s0 + $0x1c] sm:$0xf]
  %v32 = vld [vmem:[%s2] sm:$0xff]
  %v33 = vld [vmem:[%s2 + $0x8] sm:$0xff]
  %v34 = vld [vmem:[%s2 + $0x10] sm:$0xff]
  %v35 = vld [vmem:[%s2 + $0x18] sm:$0xff]
  %v36 = vld [vmem:[%s4] sm:$0x3]
  %v38 = vlaneseq
  %v39 = vshrl.u32 %v38, 7
  %v40 = vsub.s32 0, %v39
  %v41 = vrot.slane %v36, %v40
  %v42 = vlaneseq
  %v43 = vshrl.u32 %v42, 7
  %v44 = vsub.s32 1, %v43
  %v45 = vrot.slane %v36, %v44
  %v56 = vunpack.c.l.b16 %v24
  %v57 = vunpack.c.l.b16 %v25
  %v58 = vunpack.c.l.b16 %v26
  %v59 = vunpack.c.l.b16 %v27
  %v60 = vunpack.c.l.b16 %v28
  %v61 = vunpack.c.l.b16 %v29
  %v62 = vunpack.c.l.b16 %v30
  %v63 = vunpack.c.l.b16 %v31
  %v64 = vpack.c.b16 %v57, %v56
  %v65 = vpack.c.b16 %v59, %v58
  %v66 = vpack.c.b16 %v61, %v60
  %v67 = vpack.c.b16 %v63, %v62
  %v72 = vunpack.c.l.b16 %v32
  %v73 = vunpack.c.h.b16 %v32
  %v74 = vunpack.c.l.b16 %v33
  %v75 = vunpack.c.h.b16 %v33
  %v76 = vunpack.c.l.b16 %v34
  %v77 = vunpack.c.h.b16 %v34
  %v78 = vunpack.c.l.b16 %v35
  %v79 = vunpack.c.h.b16 %v35
  %v80 = vpack.c.b16 %v74, %v72
  %v81 = vpack.c.b16 %v75, %v73
  %v82 = vpack.c.b16 %v78, %v76
  %v83 = vpack.c.b16 %v79, %v77
  %vm88 = vcmask 261120
  %v90 = vsel %vm88, %v64, 0
  %v93 = vsel %vm88, %v65, 0
  %v96 = vsel %vm88, %v66, 0
  %v99 = vsel %vm88, %v67, 0
  %101 = vmatprep.subr.bf16.mxu0 0
  %102 = vmatpush1.bf16.msra.mxu0 0
  %103 = vmatprep.subr.bf16.mxu0 0
  %104 = vmatpush1.bf16.msra.mxu0 0
  %105 = vmatprep.subr.bf16.mxu0 0
  %106 = vmatpush1.bf16.msra.mxu0 0
  %107 = vmatprep.subr.bf16.mxu0 0
  %108 = vmatpush1.bf16.msra.mxu0 0
  %109 = vmatprep.subr.bf16.mxu0 0
  %110 = vmatpush1.bf16.msra.mxu0 0
  %111 = vmatprep.subr.bf16.mxu0 0
  %112 = vmatpush1.bf16.msra.mxu0 0
  %113 = vmatprep.subr.bf16.mxu0 %v83
  %114 = vmatpush1.bf16.msra.mxu0 %v82
  %115 = vmatprep.subr.bf16.mxu0 %v81
  %116 = vmatpush1.bf16.msra.mxu0 %v80
  %117 = vmatprep.subr.bf16.mxu0 0
  %118 = vmatpush2.bf16.msra.mxu0 0
  %119 = vmatprep.subr.bf16.mxu0 0
  %120 = vmatpush2.bf16.msra.mxu0 0
  %121 = vmatprep.subr.bf16.mxu0 0
  %122 = vmatpush2.bf16.msra.mxu0 0
  %123 = vmatprep.subr.bf16.mxu0 0
  %124 = vmatpush2.bf16.msra.mxu0 0
  %125 = vmatprep.subr.bf16.mxu0 0
  %126 = vmatpush2.bf16.msra.mxu0 0
  %127 = vmatprep.subr.bf16.mxu0 0
  %128 = vmatpush2.bf16.msra.mxu0 0
  %129 = vmatprep.subr.bf16.mxu0 0
  %130 = vmatpush2.bf16.msra.mxu0 0
  %131 = vmatprep.subr.bf16.mxu0 0
  %132 = vmatpush2.bf16.msra.mxu0 0
  %133 = vmatprep.mubr.bf16.mxu0 0
  %134 = vmatmul.mubr.bf16.gmra.mxu0 %v90
  %v135 = vpop.f32.mrf.mxu0
  %v136 = vadd.f32 %v41, %v135
  %v137 = vpop.f32.mrf.mxu0
  %v138 = vadd.f32 %v45, %v137
  %v139 = vpop.f32.mrf.mxu0
  %v140 = vadd.f32 %v41, %v139
  %v141 = vpop.f32.mrf.mxu0
  %v142 = vadd.f32 %v45, %v141
  %143 = vmatprep.mubr.bf16.mxu0 0
  %144 = vmatmul.mubr.bf16.gmra.mxu0 %v93
  %v145 = vpop.f32.mrf.mxu0
  %v146 = vadd.f32 %v41, %v145
  %v147 = vpop.f32.mrf.mxu0
  %v148 = vadd.f32 %v45, %v147
  %v149 = vpop.f32.mrf.mxu0
  %v150 = vadd.f32 %v41, %v149
  %v151 = vpop.f32.mrf.mxu0
  %v152 = vadd.f32 %v45, %v151
  %153 = vmatprep.mubr.bf16.mxu0 0
  %154 = vmatmul.mubr.bf16.gmra.mxu0 %v96
  %v155 = vpop.f32.mrf.mxu0
  %v156 = vadd.f32 %v41, %v155
  %v157 = vpop.f32.mrf.mxu0
  %v158 = vadd.f32 %v45, %v157
  %v159 = vpop.f32.mrf.mxu0
  %v160 = vadd.f32 %v41, %v159
  %v161 = vpop.f32.mrf.mxu0
  %v162 = vadd.f32 %v45, %v161
  %163 = vmatprep.mubr.bf16.mxu0 0
  %164 = vmatmul.mubr.bf16.gmra.mxu0 %v99
  %v165 = vpop.f32.mrf.mxu0
  %v166 = vadd.f32 %v41, %v165
  %v167 = vpop.f32.mrf.mxu0
  %v168 = vadd.f32 %v45, %v167
  %v169 = vpop.f32.mrf.mxu0
  %v170 = vadd.f32 %v41, %v169
  %v171 = vpop.f32.mrf.mxu0
  %v172 = vadd.f32 %v45, %v171
  %173 = vdwg.mxu0
  %174 = vst [vmem:[#allocation5] sm:$0xff] %v136
  %175 = vst [vmem:[#allocation5 + $0x8] sm:$0xff] %v138
  %176 = vst [vmem:[#allocation5 + $0x10] sm:$0xff] %v140
  %177 = vst [vmem:[#allocation5 + $0x18] sm:$0xff] %v142
  %178 = vst [vmem:[#allocation5 + $0x20] sm:$0xff] %v146
  %179 = vst [vmem:[#allocation5 + $0x28] sm:$0xff] %v148
  %180 = vst [vmem:[#allocation5 + $0x30] sm:$0xff] %v150
  %181 = vst [vmem:[#allocation5 + $0x38] sm:$0xff] %v152
  %182 = vst [vmem:[#allocation5 + $0x40] sm:$0xff] %v156
  %183 = vst [vmem:[#allocation5 + $0x48] sm:$0xff] %v158
  %184 = vst [vmem:[#allocation5 + $0x50] sm:$0xff] %v160
  %185 = vst [vmem:[#allocation5 + $0x58] sm:$0xff] %v162
  %186 = vst [vmem:[#allocation5 + $0x60] sm:$0xff] %v166
  %187 = vst [vmem:[#allocation5 + $0x68] sm:$0xff] %v168
  %188 = vst [vmem:[#allocation5 + $0x70] sm:$0xff] %v170
  %189 = vst [vmem:[#allocation5 + $0x78] sm:$0xff] %v172
  %v190 = vlaneseq
  %v191 = vand.u32 %v190, 127
  %vm192 = vcmp.lt.s32.totalorder %v191, 32
  %v193 = vsel %vm192, 0, 7
  %v194 = vsel %vm192, 1, 6
  %v195 = vsel %vm192, 2, 5
  %v196 = vsel %vm192, 3, 4
  %v197 = vsel %vm192, 4, 3
  %v198 = vsel %vm192, 5, 2
  %v199 = vsel %vm192, 6, 1
  %v200 = vsel %vm192, 7, 0
  %v201 = vld [vmem:[%s1] sm:$0xff]
  %202 = vset.pattern.permute.xlu0 0
  %203 = vperm.xlu0 %202, %v201
  %v204 = vpop.permute.xlu0 %203
  %vm205 = vcmp.ge.s32.totalorder %v204, %v193
  %vm206 = vcmp.ge.s32.totalorder %v204, %v194
  %vm207 = vcmp.ge.s32.totalorder %v204, %v195
  %vm208 = vcmp.ge.s32.totalorder %v204, %v196
  %vm209 = vcmp.ge.s32.totalorder %v204, %v197
  %vm210 = vcmp.ge.s32.totalorder %v204, %v198
  %vm211 = vcmp.ge.s32.totalorder %v204, %v199
  %vm212 = vcmp.ge.s32.totalorder %v204, %v200
  %v213 = vsel %vm205, 1, 0
  %v214 = vsel %vm206, 1, 0
  %v215 = vsel %vm207, 1, 0
  %v216 = vsel %vm208, 1, 0
  %v217 = vsel %vm209, 1, 0
  %v218 = vsel %vm210, 1, 0
  %v219 = vsel %vm211, 1, 0
  %v220 = vsel %vm212, 1, 0
  %v221 = vcvt.s32.f32 %v213
  %v222 = vcvt.s32.f32 %v214
  %v223 = vcvt.s32.f32 %v215
  %v224 = vcvt.s32.f32 %v216
  %v225 = vcvt.s32.f32 %v217
  %v226 = vcvt.s32.f32 %v218
  %v227 = vcvt.s32.f32 %v219
  %v228 = vcvt.s32.f32 %v220
  %vm229 = vcmask 523264
  %230 = vst.msk [vmem:[#allocation6] sm:$0xff] %vm229, %v221
  %231 = vst.msk [vmem:[#allocation6 + $0x8] sm:$0xff] %vm229, %v222
  %232 = vst.msk [vmem:[#allocation6 + $0x10] sm:$0xff] %vm229, %v223
  %233 = vst.msk [vmem:[#allocation6 + $0x18] sm:$0xff] %vm229, %v224
  %234 = vst.msk [vmem:[#allocation6 + $0x20] sm:$0xff] %vm229, %v225
  %235 = vst.msk [vmem:[#allocation6 + $0x28] sm:$0xff] %vm229, %v226
  %236 = vst.msk [vmem:[#allocation6 + $0x30] sm:$0xff] %vm229, %v227
  %237 = vst.msk [vmem:[#allocation6 + $0x38] sm:$0xff] %vm229, %v228
  %238 = vst.msk [vmem:[#allocation2] sm:$0xff] %vm229, 0.0
  %239 = vst.msk [vmem:[#allocation3] sm:$0xff] %vm229, 0.0
  %vm240 = vcmask 519168
  %241 = vst.msk [vmem:[#allocation4] sm:$0xf] %vm240, 0
  %v242 = vadd.s32 %v191, 128
  %vm243 = vcmp.lt.s32.totalorder %v191, 0
  %v244 = vsub.s32 0, %v191
  %v245 = vsel %vm243, %v244, %v191
  %v246 = vshrl.u32 %v245, 6
  %v247 = vand.u32 %v245, 63
  %v248 = vsub.s32 0, %v247
  %v249 = vsel %vm243, %v248, %v247
  %vm250 = vcmp.lt.s32.totalorder %v242, 0
  %v251 = vsub.s32 0, %v242
  %v252 = vsel %vm250, %v251, %v242
  %v253 = vshrl.u32 %v252, 6
  %v254 = vand.u32 %v252, 63
  %v255 = vsub.s32 0, %v254
  %v256 = vsel %vm250, %v255, %v254
  %vm257 = vcmp.ne.s32.totalorder %v249, 0
  %vm258 = vcmp.ne.s32.totalorder %v256, 0
  %vm259 = vcmp.lt.s32.totalorder %v249, 0
  %vm260 = vcmp.lt.s32.totalorder %v256, 0
  %vm261 = vmand %vm259, %vm257
  %vm262 = vmand %vm260, %vm258
  %v263 = vadd.s32 %v249, 64
  %v264 = vadd.s32 %v256, 64
  %v265 = vsel %vm261, %v263, %v249
  %v266 = vsel %vm262, %v264, %v256
  %vm267 = vcmp.lt.s32.totalorder %v265, 32
  %vm268 = vcmp.lt.s32.totalorder %v266, 32
  %vm269 = vcmp.ge.s32.totalorder %v191, 128
  %vm270 = vcmp.ge.s32.totalorder %v242, 128
  %vm271 = vcmp.lt.s32.totalorder %v191, 192
  %vm272 = vcmp.lt.s32.totalorder %v242, 192
  %vm273 = vmand %vm269, %vm271
  %vm274 = vmand %vm270, %vm272
  %s275 = smul.u32 0, 2
  %s276 = smul.addr %s275, 8
  %s277 = scalar_lea.vmem [#allocation5], %s276
  %v278 = vld [vmem:[%s277] sm:$0xff]
  %v279 = vld [vmem:[%s277 + $0x8] sm:$0xff]
  %s280 = smul.u32 7, 2
  %s281 = smul.addr %s280, 8
  %s282 = scalar_lea.vmem [#allocation5], %s281
  %v283 = vld [vmem:[%s282] sm:$0xff]
  %v284 = vld [vmem:[%s282 + $0x8] sm:$0xff]
  %v285 = vsel %vm267, %v278, %v283
  %v286 = vsel %vm268, %v279, %v284
  %v287 = vld [vmem:[#allocation4] sm:$0xf]
  %v288 = vld [vmem:[%s3] sm:$0xff]
  %v289 = vld [vmem:[%s3 + $0x8] sm:$0xff]
  %v290 = vld [vmem:[%s3 + $0x10] sm:$0xff]
  %v291 = vld [vmem:[%s3 + $0x18] sm:$0xff]
  %v292 = vld [vmem:[%s3 + $0x20] sm:$0xff]
  %v293 = vld [vmem:[%s3 + $0x28] sm:$0xff]
  %v294 = vld [vmem:[%s3 + $0x30] sm:$0xff]
  %v295 = vld [vmem:[%s3 + $0x38] sm:$0xff]
  %v304 = vunpack.c.l.b16 %v288
  %v305 = vunpack.c.h.b16 %v288
  %v306 = vunpack.c.l.b16 %v289
  %v307 = vunpack.c.h.b16 %v289
  %v308 = vunpack.c.l.b16 %v290
  %v309 = vunpack.c.h.b16 %v290
  %v310 = vunpack.c.l.b16 %v291
  %v311 = vunpack.c.h.b16 %v291
  %v312 = vunpack.c.l.b16 %v292
  %v313 = vunpack.c.h.b16 %v292
  %v314 = vunpack.c.l.b16 %v293
  %v315 = vunpack.c.h.b16 %v293
  %v316 = vunpack.c.l.b16 %v294
  %v317 = vunpack.c.h.b16 %v294
  %v318 = vunpack.c.l.b16 %v295
  %v319 = vunpack.c.h.b16 %v295
  %v320 = vpack.c.b16 %v306, %v304
  %v321 = vpack.c.b16 %v307, %v305
  %v322 = vpack.c.b16 %v310, %v308
  %v323 = vpack.c.b16 %v311, %v309
  %v324 = vpack.c.b16 %v314, %v312
  %v325 = vpack.c.b16 %v315, %v313
  %v326 = vpack.c.b16 %v318, %v316
  %v327 = vpack.c.b16 %v319, %v317
  %v337 = vsel %vm229, %v287, 0
  %339 = vmatprep.subr.bf16.mxu0 0
  %340 = vmatpush1.bf16.msra.mxu0 0
  %341 = vmatprep.subr.bf16.mxu0 0
  %342 = vmatpush1.bf16.msra.mxu0 0
  %343 = vmatprep.subr.bf16.mxu0 0
  %344 = vmatpush1.bf16.msra.mxu0 0
  %345 = vmatprep.subr.bf16.mxu0 0
  %346 = vmatpush1.bf16.msra.mxu0 0
  %347 = vmatprep.subr.bf16.mxu0 %v327
  %348 = vmatpush1.bf16.msra.mxu0 %v326
  %349 = vmatprep.subr.bf16.mxu0 %v325
  %350 = vmatpush1.bf16.msra.mxu0 %v324
  %351 = vmatprep.subr.bf16.mxu0 %v323
  %352 = vmatpush1.bf16.msra.mxu0 %v322
  %353 = vmatprep.subr.bf16.mxu0 %v321
  %354 = vmatpush1.bf16.msra.mxu0 %v320
  %355 = vmatprep.subr.bf16.mxu0 0
  %356 = vmatpush2.bf16.msra.mxu0 0
  %357 = vmatprep.subr.bf16.mxu0 0
  %358 = vmatpush2.bf16.msra.mxu0 0
  %359 = vmatprep.subr.bf16.mxu0 0
  %360 = vmatpush2.bf16.msra.mxu0 0
  %361 = vmatprep.subr.bf16.mxu0 0
  %362 = vmatpush2.bf16.msra.mxu0 0
  %363 = vmatprep.subr.bf16.mxu0 0
  %364 = vmatpush2.bf16.msra.mxu0 0
  %365 = vmatprep.subr.bf16.mxu0 0
  %366 = vmatpush2.bf16.msra.mxu0 0
  %367 = vmatprep.subr.bf16.mxu0 0
  %368 = vmatpush2.bf16.msra.mxu0 0
  %369 = vmatprep.subr.bf16.mxu0 0
  %370 = vmatpush2.bf16.msra.mxu0 0
  %371 = vmatprep.mubr.bf16.mxu0 0
  %372 = vmatmul.mubr.bf16.gmra.mxu0 %v337
  %v373 = vpop.f32.mrf.mxu0
  %v374 = vadd.f32 0.0, %v373
  %v375 = vpop.f32.mrf.mxu0
  %v376 = vadd.f32 0.0, %v375
  %v377 = vpop.f32.mrf.mxu0
  %v378 = vpop.f32.mrf.mxu0
  %379 = vdwg.mxu0
  %v380 = vadd.f32 %v285, %v374
  %v381 = vadd.f32 %v286, %v376
  %v382 = vmul.f32 %v380, 0.5
  %v383 = vmul.f32 %v381, 0.5
  %v384 = vsel %vm273, %v380, %v382
  %v385 = vsel %vm274, %v381, %v383
  %v386 = vtanh.pop %v384
  %v387 = vtanh.pop %v385
  %v388 = vmul.f32 %v386, 0.5
  %v389 = vmul.f32 %v387, 0.5
  %v390 = vadd.f32 %v388, 0.5
  %v391 = vadd.f32 %v389, 0.5
  %v392 = vsel %vm273, %v386, %v390
  %v393 = vsel %vm274, %v387, %v391
  %v394 = vld [vmem:[#allocation2] sm:$0xff]
  %v395 = vld [vmem:[#allocation3] sm:$0xff]
  %397 = vrot.lane.b32.xlu0 %v395, 64
  %v398 = vpop.permute.xlu0 %397
  %v400 = vmul.f32 %v392, %v398
  %v401 = vmul.f32 %v392, %v393
  %403 = vrot.lane.b32.xlu0 %v401, 64
  %v404 = vpop.permute.xlu0 %403
  %v406 = vadd.f32 %v400, %v404
  %v407 = vtanh.pop %v406
  %v408 = vmul.f32 %v393, %v407
  %v409 = vld [vmem:[#allocation6] sm:$0xff]
  %411 = vrot.lane.b32.xlu0 %v394, 64
  %v412 = vpop.permute.xlu0 %411
  %v414 = vsub.f32 %v408, %v412
  %416 = vrot.lane.b32.xlu0 %v414, 64
  %v417 = vpop.permute.xlu0 %416
  %v419 = vmul.f32 %v409, %v417
  %v420 = vadd.f32 %v394, %v419
  %v421 = vsub.f32 %v406, %v398
  %423 = vrot.lane.b32.xlu0 %v421, 64
  %v424 = vpop.permute.xlu0 %423
  %v426 = vmul.f32 %v409, %v424
  %v427 = vadd.f32 %v395, %v426
  %428 = vst.msk [vmem:[#allocation3] sm:$0xff] %vm229, %v427
  %429 = vst.msk [vmem:[#allocation2] sm:$0xff] %vm229, %v420
  %v430 = vpack.c.bf16 %v420, %v420
  %431 = vst.msk [vmem:[#allocation4] sm:$0xf] %vm240, %v430
  %s432 = smul.u32 1, 2
  %s433 = smul.addr %s432, 8
  %s434 = scalar_lea.vmem [#allocation5], %s433
  %v435 = vld [vmem:[%s434] sm:$0xff]
  %v436 = vld [vmem:[%s434 + $0x8] sm:$0xff]
  %s437 = smul.u32 6, 2
  %s438 = smul.addr %s437, 8
  %s439 = scalar_lea.vmem [#allocation5], %s438
  %v440 = vld [vmem:[%s439] sm:$0xff]
  %v441 = vld [vmem:[%s439 + $0x8] sm:$0xff]
  %v442 = vsel %vm267, %v435, %v440
  %v443 = vsel %vm268, %v436, %v441
  %v444 = vld [vmem:[#allocation4] sm:$0xf]
  %v445 = vld [vmem:[%s3] sm:$0xff]
  %v446 = vld [vmem:[%s3 + $0x8] sm:$0xff]
  %v447 = vld [vmem:[%s3 + $0x10] sm:$0xff]
  %v448 = vld [vmem:[%s3 + $0x18] sm:$0xff]
  %v449 = vld [vmem:[%s3 + $0x20] sm:$0xff]
  %v450 = vld [vmem:[%s3 + $0x28] sm:$0xff]
  %v451 = vld [vmem:[%s3 + $0x30] sm:$0xff]
  %v452 = vld [vmem:[%s3 + $0x38] sm:$0xff]
  %v461 = vunpack.c.l.b16 %v445
  %v462 = vunpack.c.h.b16 %v445
  %v463 = vunpack.c.l.b16 %v446
  %v464 = vunpack.c.h.b16 %v446
  %v465 = vunpack.c.l.b16 %v447
  %v466 = vunpack.c.h.b16 %v447
  %v467 = vunpack.c.l.b16 %v448
  %v468 = vunpack.c.h.b16 %v448
  %v469 = vunpack.c.l.b16 %v449
  %v470 = vunpack.c.h.b16 %v449
  %v471 = vunpack.c.l.b16 %v450
  %v472 = vunpack.c.h.b16 %v450
  %v473 = vunpack.c.l.b16 %v451
  %v474 = vunpack.c.h.b16 %v451
  %v475 = vunpack.c.l.b16 %v452
  %v476 = vunpack.c.h.b16 %v452
  %v477 = vpack.c.b16 %v463, %v461
  %v478 = vpack.c.b16 %v464, %v462
  %v479 = vpack.c.b16 %v467, %v465
  %v480 = vpack.c.b16 %v468, %v466
  %v481 = vpack.c.b16 %v471, %v469
  %v482 = vpack.c.b16 %v472, %v470
  %v483 = vpack.c.b16 %v475, %v473
  %v484 = vpack.c.b16 %v476, %v474
  %v494 = vsel %vm229, %v444, 0
  %496 = vmatprep.subr.bf16.mxu0 0
  %497 = vmatpush1.bf16.msra.mxu0 0
  %498 = vmatprep.subr.bf16.mxu0 0
  %499 = vmatpush1.bf16.msra.mxu0 0
  %500 = vmatprep.subr.bf16.mxu0 0
  %501 = vmatpush1.bf16.msra.mxu0 0
  %502 = vmatprep.subr.bf16.mxu0 0
  %503 = vmatpush1.bf16.msra.mxu0 0
  %504 = vmatprep.subr.bf16.mxu0 %v484
  %505 = vmatpush1.bf16.msra.mxu0 %v483
  %506 = vmatprep.subr.bf16.mxu0 %v482
  %507 = vmatpush1.bf16.msra.mxu0 %v481
  %508 = vmatprep.subr.bf16.mxu0 %v480
  %509 = vmatpush1.bf16.msra.mxu0 %v479
  %510 = vmatprep.subr.bf16.mxu0 %v478
  %511 = vmatpush1.bf16.msra.mxu0 %v477
  %512 = vmatprep.subr.bf16.mxu0 0
  %513 = vmatpush2.bf16.msra.mxu0 0
  %514 = vmatprep.subr.bf16.mxu0 0
  %515 = vmatpush2.bf16.msra.mxu0 0
  %516 = vmatprep.subr.bf16.mxu0 0
  %517 = vmatpush2.bf16.msra.mxu0 0
  %518 = vmatprep.subr.bf16.mxu0 0
  %519 = vmatpush2.bf16.msra.mxu0 0
  %520 = vmatprep.subr.bf16.mxu0 0
  %521 = vmatpush2.bf16.msra.mxu0 0
  %522 = vmatprep.subr.bf16.mxu0 0
  %523 = vmatpush2.bf16.msra.mxu0 0
  %524 = vmatprep.subr.bf16.mxu0 0
  %525 = vmatpush2.bf16.msra.mxu0 0
  %526 = vmatprep.subr.bf16.mxu0 0
  %527 = vmatpush2.bf16.msra.mxu0 0
  %528 = vmatprep.mubr.bf16.mxu0 0
  %529 = vmatmul.mubr.bf16.gmra.mxu0 %v494
  %v530 = vpop.f32.mrf.mxu0
  %v531 = vadd.f32 0.0, %v530
  %v532 = vpop.f32.mrf.mxu0
  %v533 = vadd.f32 0.0, %v532
  %v534 = vpop.f32.mrf.mxu0
  %v535 = vpop.f32.mrf.mxu0
  %536 = vdwg.mxu0
  %v537 = vadd.f32 %v442, %v531
  %v538 = vadd.f32 %v443, %v533
  %v539 = vmul.f32 %v537, 0.5
  %v540 = vmul.f32 %v538, 0.5
  %v541 = vsel %vm273, %v537, %v539
  %v542 = vsel %vm274, %v538, %v540
  %v543 = vtanh.pop %v541
  %v544 = vtanh.pop %v542
  %v545 = vmul.f32 %v543, 0.5
  %v546 = vmul.f32 %v544, 0.5
  %v547 = vadd.f32 %v545, 0.5
  %v548 = vadd.f32 %v546, 0.5
  %v549 = vsel %vm273, %v543, %v547
  %v550 = vsel %vm274, %v544, %v548
  %v551 = vld [vmem:[#allocation2] sm:$0xff]
  %v552 = vld [vmem:[#allocation3] sm:$0xff]
  %554 = vrot.lane.b32.xlu0 %v552, 64
  %v555 = vpop.permute.xlu0 %554
  %v557 = vmul.f32 %v549, %v555
  %v558 = vmul.f32 %v549, %v550
  %560 = vrot.lane.b32.xlu0 %v558, 64
  %v561 = vpop.permute.xlu0 %560
  %v563 = vadd.f32 %v557, %v561
  %v564 = vtanh.pop %v563
  %v565 = vmul.f32 %v550, %v564
  %s566 = scalar_lea.vmem [#allocation6], 8
  %v567 = vld [vmem:[%s566] sm:$0xff]
  %569 = vrot.lane.b32.xlu0 %v551, 64
  %v570 = vpop.permute.xlu0 %569
  %v572 = vsub.f32 %v565, %v570
  %574 = vrot.lane.b32.xlu0 %v572, 64
  %v575 = vpop.permute.xlu0 %574
  %v577 = vmul.f32 %v567, %v575
  %v578 = vadd.f32 %v551, %v577
  %v579 = vsub.f32 %v563, %v555
  %581 = vrot.lane.b32.xlu0 %v579, 64
  %v582 = vpop.permute.xlu0 %581
  %v584 = vmul.f32 %v567, %v582
  %v585 = vadd.f32 %v552, %v584
  %586 = vst.msk [vmem:[#allocation3] sm:$0xff] %vm229, %v585
  %587 = vst.msk [vmem:[#allocation2] sm:$0xff] %vm229, %v578
  %v588 = vpack.c.bf16 %v578, %v578
  %589 = vst.msk [vmem:[#allocation4] sm:$0xf] %vm240, %v588
  %s590 = smul.u32 2, 2
  %s591 = smul.addr %s590, 8
  %s592 = scalar_lea.vmem [#allocation5], %s591
  %v593 = vld [vmem:[%s592] sm:$0xff]
  %v594 = vld [vmem:[%s592 + $0x8] sm:$0xff]
  %s595 = smul.u32 5, 2
  %s596 = smul.addr %s595, 8
  %s597 = scalar_lea.vmem [#allocation5], %s596
  %v598 = vld [vmem:[%s597] sm:$0xff]
  %v599 = vld [vmem:[%s597 + $0x8] sm:$0xff]
  %v600 = vsel %vm267, %v593, %v598
  %v601 = vsel %vm268, %v594, %v599
  %v602 = vld [vmem:[#allocation4] sm:$0xf]
  %v603 = vld [vmem:[%s3] sm:$0xff]
  %v604 = vld [vmem:[%s3 + $0x8] sm:$0xff]
  %v605 = vld [vmem:[%s3 + $0x10] sm:$0xff]
  %v606 = vld [vmem:[%s3 + $0x18] sm:$0xff]
  %v607 = vld [vmem:[%s3 + $0x20] sm:$0xff]
  %v608 = vld [vmem:[%s3 + $0x28] sm:$0xff]
  %v609 = vld [vmem:[%s3 + $0x30] sm:$0xff]
  %v610 = vld [vmem:[%s3 + $0x38] sm:$0xff]
  %v619 = vunpack.c.l.b16 %v603
  %v620 = vunpack.c.h.b16 %v603
  %v621 = vunpack.c.l.b16 %v604
  %v622 = vunpack.c.h.b16 %v604
  %v623 = vunpack.c.l.b16 %v605
  %v624 = vunpack.c.h.b16 %v605
  %v625 = vunpack.c.l.b16 %v606
  %v626 = vunpack.c.h.b16 %v606
  %v627 = vunpack.c.l.b16 %v607
  %v628 = vunpack.c.h.b16 %v607
  %v629 = vunpack.c.l.b16 %v608
  %v630 = vunpack.c.h.b16 %v608
  %v631 = vunpack.c.l.b16 %v609
  %v632 = vunpack.c.h.b16 %v609
  %v633 = vunpack.c.l.b16 %v610
  %v634 = vunpack.c.h.b16 %v610
  %v635 = vpack.c.b16 %v621, %v619
  %v636 = vpack.c.b16 %v622, %v620
  %v637 = vpack.c.b16 %v625, %v623
  %v638 = vpack.c.b16 %v626, %v624
  %v639 = vpack.c.b16 %v629, %v627
  %v640 = vpack.c.b16 %v630, %v628
  %v641 = vpack.c.b16 %v633, %v631
  %v642 = vpack.c.b16 %v634, %v632
  %v652 = vsel %vm229, %v602, 0
  %654 = vmatprep.subr.bf16.mxu0 0
  %655 = vmatpush1.bf16.msra.mxu0 0
  %656 = vmatprep.subr.bf16.mxu0 0
  %657 = vmatpush1.bf16.msra.mxu0 0
  %658 = vmatprep.subr.bf16.mxu0 0
  %659 = vmatpush1.bf16.msra.mxu0 0
  %660 = vmatprep.subr.bf16.mxu0 0
  %661 = vmatpush1.bf16.msra.mxu0 0
  %662 = vmatprep.subr.bf16.mxu0 %v642
  %663 = vmatpush1.bf16.msra.mxu0 %v641
  %664 = vmatprep.subr.bf16.mxu0 %v640
  %665 = vmatpush1.bf16.msra.mxu0 %v639
  %666 = vmatprep.subr.bf16.mxu0 %v638
  %667 = vmatpush1.bf16.msra.mxu0 %v637
  %668 = vmatprep.subr.bf16.mxu0 %v636
  %669 = vmatpush1.bf16.msra.mxu0 %v635
  %670 = vmatprep.subr.bf16.mxu0 0
  %671 = vmatpush2.bf16.msra.mxu0 0
  %672 = vmatprep.subr.bf16.mxu0 0
  %673 = vmatpush2.bf16.msra.mxu0 0
  %674 = vmatprep.subr.bf16.mxu0 0
  %675 = vmatpush2.bf16.msra.mxu0 0
  %676 = vmatprep.subr.bf16.mxu0 0
  %677 = vmatpush2.bf16.msra.mxu0 0
  %678 = vmatprep.subr.bf16.mxu0 0
  %679 = vmatpush2.bf16.msra.mxu0 0
  %680 = vmatprep.subr.bf16.mxu0 0
  %681 = vmatpush2.bf16.msra.mxu0 0
  %682 = vmatprep.subr.bf16.mxu0 0
  %683 = vmatpush2.bf16.msra.mxu0 0
  %684 = vmatprep.subr.bf16.mxu0 0
  %685 = vmatpush2.bf16.msra.mxu0 0
  %686 = vmatprep.mubr.bf16.mxu0 0
  %687 = vmatmul.mubr.bf16.gmra.mxu0 %v652
  %v688 = vpop.f32.mrf.mxu0
  %v689 = vadd.f32 0.0, %v688
  %v690 = vpop.f32.mrf.mxu0
  %v691 = vadd.f32 0.0, %v690
  %v692 = vpop.f32.mrf.mxu0
  %v693 = vpop.f32.mrf.mxu0
  %694 = vdwg.mxu0
  %v695 = vadd.f32 %v600, %v689
  %v696 = vadd.f32 %v601, %v691
  %v697 = vmul.f32 %v695, 0.5
  %v698 = vmul.f32 %v696, 0.5
  %v699 = vsel %vm273, %v695, %v697
  %v700 = vsel %vm274, %v696, %v698
  %v701 = vtanh.pop %v699
  %v702 = vtanh.pop %v700
  %v703 = vmul.f32 %v701, 0.5
  %v704 = vmul.f32 %v702, 0.5
  %v705 = vadd.f32 %v703, 0.5
  %v706 = vadd.f32 %v704, 0.5
  %v707 = vsel %vm273, %v701, %v705
  %v708 = vsel %vm274, %v702, %v706
  %v709 = vld [vmem:[#allocation2] sm:$0xff]
  %v710 = vld [vmem:[#allocation3] sm:$0xff]
  %712 = vrot.lane.b32.xlu0 %v710, 64
  %v713 = vpop.permute.xlu0 %712
  %v715 = vmul.f32 %v707, %v713
  %v716 = vmul.f32 %v707, %v708
  %718 = vrot.lane.b32.xlu0 %v716, 64
  %v719 = vpop.permute.xlu0 %718
  %v721 = vadd.f32 %v715, %v719
  %v722 = vtanh.pop %v721
  %v723 = vmul.f32 %v708, %v722
  %s724 = scalar_lea.vmem [#allocation6], 16
  %v725 = vld [vmem:[%s724] sm:$0xff]
  %727 = vrot.lane.b32.xlu0 %v709, 64
  %v728 = vpop.permute.xlu0 %727
  %v730 = vsub.f32 %v723, %v728
  %732 = vrot.lane.b32.xlu0 %v730, 64
  %v733 = vpop.permute.xlu0 %732
  %v735 = vmul.f32 %v725, %v733
  %v736 = vadd.f32 %v709, %v735
  %v737 = vsub.f32 %v721, %v713
  %739 = vrot.lane.b32.xlu0 %v737, 64
  %v740 = vpop.permute.xlu0 %739
  %v742 = vmul.f32 %v725, %v740
  %v743 = vadd.f32 %v710, %v742
  %744 = vst.msk [vmem:[#allocation3] sm:$0xff] %vm229, %v743
  %745 = vst.msk [vmem:[#allocation2] sm:$0xff] %vm229, %v736
  %v746 = vpack.c.bf16 %v736, %v736
  %747 = vst.msk [vmem:[#allocation4] sm:$0xf] %vm240, %v746
  %s748 = smul.u32 3, 2
  %s749 = smul.addr %s748, 8
  %s750 = scalar_lea.vmem [#allocation5], %s749
  %v751 = vld [vmem:[%s750] sm:$0xff]
  %v752 = vld [vmem:[%s750 + $0x8] sm:$0xff]
  %s753 = smul.u32 4, 2
  %s754 = smul.addr %s753, 8
  %s755 = scalar_lea.vmem [#allocation5], %s754
  %v756 = vld [vmem:[%s755] sm:$0xff]
  %v757 = vld [vmem:[%s755 + $0x8] sm:$0xff]
  %v758 = vsel %vm267, %v751, %v756
  %v759 = vsel %vm268, %v752, %v757
  %v760 = vld [vmem:[#allocation4] sm:$0xf]
  %v761 = vld [vmem:[%s3] sm:$0xff]
  %v762 = vld [vmem:[%s3 + $0x8] sm:$0xff]
  %v763 = vld [vmem:[%s3 + $0x10] sm:$0xff]
  %v764 = vld [vmem:[%s3 + $0x18] sm:$0xff]
  %v765 = vld [vmem:[%s3 + $0x20] sm:$0xff]
  %v766 = vld [vmem:[%s3 + $0x28] sm:$0xff]
  %v767 = vld [vmem:[%s3 + $0x30] sm:$0xff]
  %v768 = vld [vmem:[%s3 + $0x38] sm:$0xff]
  %v777 = vunpack.c.l.b16 %v761
  %v778 = vunpack.c.h.b16 %v761
  %v779 = vunpack.c.l.b16 %v762
  %v780 = vunpack.c.h.b16 %v762
  %v781 = vunpack.c.l.b16 %v763
  %v782 = vunpack.c.h.b16 %v763
  %v783 = vunpack.c.l.b16 %v764
  %v784 = vunpack.c.h.b16 %v764
  %v785 = vunpack.c.l.b16 %v765
  %v786 = vunpack.c.h.b16 %v765
  %v787 = vunpack.c.l.b16 %v766
  %v788 = vunpack.c.h.b16 %v766
  %v789 = vunpack.c.l.b16 %v767
  %v790 = vunpack.c.h.b16 %v767
  %v791 = vunpack.c.l.b16 %v768
  %v792 = vunpack.c.h.b16 %v768
  %v793 = vpack.c.b16 %v779, %v777
  %v794 = vpack.c.b16 %v780, %v778
  %v795 = vpack.c.b16 %v783, %v781
  %v796 = vpack.c.b16 %v784, %v782
  %v797 = vpack.c.b16 %v787, %v785
  %v798 = vpack.c.b16 %v788, %v786
  %v799 = vpack.c.b16 %v791, %v789
  %v800 = vpack.c.b16 %v792, %v790
  %v810 = vsel %vm229, %v760, 0
  %812 = vmatprep.subr.bf16.mxu0 0
  %813 = vmatpush1.bf16.msra.mxu0 0
  %814 = vmatprep.subr.bf16.mxu0 0
  %815 = vmatpush1.bf16.msra.mxu0 0
  %816 = vmatprep.subr.bf16.mxu0 0
  %817 = vmatpush1.bf16.msra.mxu0 0
  %818 = vmatprep.subr.bf16.mxu0 0
  %819 = vmatpush1.bf16.msra.mxu0 0
  %820 = vmatprep.subr.bf16.mxu0 %v800
  %821 = vmatpush1.bf16.msra.mxu0 %v799
  %822 = vmatprep.subr.bf16.mxu0 %v798
  %823 = vmatpush1.bf16.msra.mxu0 %v797
  %824 = vmatprep.subr.bf16.mxu0 %v796
  %825 = vmatpush1.bf16.msra.mxu0 %v795
  %826 = vmatprep.subr.bf16.mxu0 %v794
  %827 = vmatpush1.bf16.msra.mxu0 %v793
  %828 = vmatprep.subr.bf16.mxu0 0
  %829 = vmatpush2.bf16.msra.mxu0 0
  %830 = vmatprep.subr.bf16.mxu0 0
  %831 = vmatpush2.bf16.msra.mxu0 0
  %832 = vmatprep.subr.bf16.mxu0 0
  %833 = vmatpush2.bf16.msra.mxu0 0
  %834 = vmatprep.subr.bf16.mxu0 0
  %835 = vmatpush2.bf16.msra.mxu0 0
  %836 = vmatprep.subr.bf16.mxu0 0
  %837 = vmatpush2.bf16.msra.mxu0 0
  %838 = vmatprep.subr.bf16.mxu0 0
  %839 = vmatpush2.bf16.msra.mxu0 0
  %840 = vmatprep.subr.bf16.mxu0 0
  %841 = vmatpush2.bf16.msra.mxu0 0
  %842 = vmatprep.subr.bf16.mxu0 0
  %843 = vmatpush2.bf16.msra.mxu0 0
  %844 = vmatprep.mubr.bf16.mxu0 0
  %845 = vmatmul.mubr.bf16.gmra.mxu0 %v810
  %v846 = vpop.f32.mrf.mxu0
  %v847 = vadd.f32 0.0, %v846
  %v848 = vpop.f32.mrf.mxu0
  %v849 = vadd.f32 0.0, %v848
  %v850 = vpop.f32.mrf.mxu0
  %v851 = vpop.f32.mrf.mxu0
  %852 = vdwg.mxu0
  %v853 = vadd.f32 %v758, %v847
  %v854 = vadd.f32 %v759, %v849
  %v855 = vmul.f32 %v853, 0.5
  %v856 = vmul.f32 %v854, 0.5
  %v857 = vsel %vm273, %v853, %v855
  %v858 = vsel %vm274, %v854, %v856
  %v859 = vtanh.pop %v857
  %v860 = vtanh.pop %v858
  %v861 = vmul.f32 %v859, 0.5
  %v862 = vmul.f32 %v860, 0.5
  %v863 = vadd.f32 %v861, 0.5
  %v864 = vadd.f32 %v862, 0.5
  %v865 = vsel %vm273, %v859, %v863
  %v866 = vsel %vm274, %v860, %v864
  %v867 = vld [vmem:[#allocation2] sm:$0xff]
  %v868 = vld [vmem:[#allocation3] sm:$0xff]
  %870 = vrot.lane.b32.xlu0 %v868, 64
  %v871 = vpop.permute.xlu0 %870
  %v873 = vmul.f32 %v865, %v871
  %v874 = vmul.f32 %v865, %v866
  %876 = vrot.lane.b32.xlu0 %v874, 64
  %v877 = vpop.permute.xlu0 %876
  %v879 = vadd.f32 %v873, %v877
  %v880 = vtanh.pop %v879
  %v881 = vmul.f32 %v866, %v880
  %s882 = scalar_lea.vmem [#allocation6], 24
  %v883 = vld [vmem:[%s882] sm:$0xff]
  %885 = vrot.lane.b32.xlu0 %v867, 64
  %v886 = vpop.permute.xlu0 %885
  %v888 = vsub.f32 %v881, %v886
  %890 = vrot.lane.b32.xlu0 %v888, 64
  %v891 = vpop.permute.xlu0 %890
  %v893 = vmul.f32 %v883, %v891
  %v894 = vadd.f32 %v867, %v893
  %v895 = vsub.f32 %v879, %v871
  %897 = vrot.lane.b32.xlu0 %v895, 64
  %v898 = vpop.permute.xlu0 %897
  %v900 = vmul.f32 %v883, %v898
  %v901 = vadd.f32 %v868, %v900
  %902 = vst.msk [vmem:[#allocation3] sm:$0xff] %vm229, %v901
  %903 = vst.msk [vmem:[#allocation2] sm:$0xff] %vm229, %v894
  %v904 = vpack.c.bf16 %v894, %v894
  %905 = vst.msk [vmem:[#allocation4] sm:$0xf] %vm240, %v904
  %v906 = vld [vmem:[%s755] sm:$0xff]
  %v907 = vld [vmem:[%s755 + $0x8] sm:$0xff]
  %v908 = vld [vmem:[%s750] sm:$0xff]
  %v909 = vld [vmem:[%s750 + $0x8] sm:$0xff]
  %v910 = vsel %vm267, %v906, %v908
  %v911 = vsel %vm268, %v907, %v909
  %v912 = vld [vmem:[#allocation4] sm:$0xf]
  %v913 = vld [vmem:[%s3] sm:$0xff]
  %v914 = vld [vmem:[%s3 + $0x8] sm:$0xff]
  %v915 = vld [vmem:[%s3 + $0x10] sm:$0xff]
  %v916 = vld [vmem:[%s3 + $0x18] sm:$0xff]
  %v917 = vld [vmem:[%s3 + $0x20] sm:$0xff]
  %v918 = vld [vmem:[%s3 + $0x28] sm:$0xff]
  %v919 = vld [vmem:[%s3 + $0x30] sm:$0xff]
  %v920 = vld [vmem:[%s3 + $0x38] sm:$0xff]
  %v929 = vunpack.c.l.b16 %v913
  %v930 = vunpack.c.h.b16 %v913
  %v931 = vunpack.c.l.b16 %v914
  %v932 = vunpack.c.h.b16 %v914
  %v933 = vunpack.c.l.b16 %v915
  %v934 = vunpack.c.h.b16 %v915
  %v935 = vunpack.c.l.b16 %v916
  %v936 = vunpack.c.h.b16 %v916
  %v937 = vunpack.c.l.b16 %v917
  %v938 = vunpack.c.h.b16 %v917
  %v939 = vunpack.c.l.b16 %v918
  %v940 = vunpack.c.h.b16 %v918
  %v941 = vunpack.c.l.b16 %v919
  %v942 = vunpack.c.h.b16 %v919
  %v943 = vunpack.c.l.b16 %v920
  %v944 = vunpack.c.h.b16 %v920
  %v945 = vpack.c.b16 %v931, %v929
  %v946 = vpack.c.b16 %v932, %v930
  %v947 = vpack.c.b16 %v935, %v933
  %v948 = vpack.c.b16 %v936, %v934
  %v949 = vpack.c.b16 %v939, %v937
  %v950 = vpack.c.b16 %v940, %v938
  %v951 = vpack.c.b16 %v943, %v941
  %v952 = vpack.c.b16 %v944, %v942
  %v962 = vsel %vm229, %v912, 0
  %964 = vmatprep.subr.bf16.mxu0 0
  %965 = vmatpush1.bf16.msra.mxu0 0
  %966 = vmatprep.subr.bf16.mxu0 0
  %967 = vmatpush1.bf16.msra.mxu0 0
  %968 = vmatprep.subr.bf16.mxu0 0
  %969 = vmatpush1.bf16.msra.mxu0 0
  %970 = vmatprep.subr.bf16.mxu0 0
  %971 = vmatpush1.bf16.msra.mxu0 0
  %972 = vmatprep.subr.bf16.mxu0 %v952
  %973 = vmatpush1.bf16.msra.mxu0 %v951
  %974 = vmatprep.subr.bf16.mxu0 %v950
  %975 = vmatpush1.bf16.msra.mxu0 %v949
  %976 = vmatprep.subr.bf16.mxu0 %v948
  %977 = vmatpush1.bf16.msra.mxu0 %v947
  %978 = vmatprep.subr.bf16.mxu0 %v946
  %979 = vmatpush1.bf16.msra.mxu0 %v945
  %980 = vmatprep.subr.bf16.mxu0 0
  %981 = vmatpush2.bf16.msra.mxu0 0
  %982 = vmatprep.subr.bf16.mxu0 0
  %983 = vmatpush2.bf16.msra.mxu0 0
  %984 = vmatprep.subr.bf16.mxu0 0
  %985 = vmatpush2.bf16.msra.mxu0 0
  %986 = vmatprep.subr.bf16.mxu0 0
  %987 = vmatpush2.bf16.msra.mxu0 0
  %988 = vmatprep.subr.bf16.mxu0 0
  %989 = vmatpush2.bf16.msra.mxu0 0
  %990 = vmatprep.subr.bf16.mxu0 0
  %991 = vmatpush2.bf16.msra.mxu0 0
  %992 = vmatprep.subr.bf16.mxu0 0
  %993 = vmatpush2.bf16.msra.mxu0 0
  %994 = vmatprep.subr.bf16.mxu0 0
  %995 = vmatpush2.bf16.msra.mxu0 0
  %996 = vmatprep.mubr.bf16.mxu0 0
  %997 = vmatmul.mubr.bf16.gmra.mxu0 %v962
  %v998 = vpop.f32.mrf.mxu0
  %v999 = vadd.f32 0.0, %v998
  %v1000 = vpop.f32.mrf.mxu0
  %v1001 = vadd.f32 0.0, %v1000
  %v1002 = vpop.f32.mrf.mxu0
  %v1003 = vpop.f32.mrf.mxu0
  %1004 = vdwg.mxu0
  %v1005 = vadd.f32 %v910, %v999
  %v1006 = vadd.f32 %v911, %v1001
  %v1007 = vmul.f32 %v1005, 0.5
  %v1008 = vmul.f32 %v1006, 0.5
  %v1009 = vsel %vm273, %v1005, %v1007
  %v1010 = vsel %vm274, %v1006, %v1008
  %v1011 = vtanh.pop %v1009
  %v1012 = vtanh.pop %v1010
  %v1013 = vmul.f32 %v1011, 0.5
  %v1014 = vmul.f32 %v1012, 0.5
  %v1015 = vadd.f32 %v1013, 0.5
  %v1016 = vadd.f32 %v1014, 0.5
  %v1017 = vsel %vm273, %v1011, %v1015
  %v1018 = vsel %vm274, %v1012, %v1016
  %v1019 = vld [vmem:[#allocation2] sm:$0xff]
  %v1020 = vld [vmem:[#allocation3] sm:$0xff]
  %1022 = vrot.lane.b32.xlu0 %v1020, 64
  %v1023 = vpop.permute.xlu0 %1022
  %v1025 = vmul.f32 %v1017, %v1023
  %v1026 = vmul.f32 %v1017, %v1018
  %1028 = vrot.lane.b32.xlu0 %v1026, 64
  %v1029 = vpop.permute.xlu0 %1028
  %v1031 = vadd.f32 %v1025, %v1029
  %v1032 = vtanh.pop %v1031
  %v1033 = vmul.f32 %v1018, %v1032
  %s1034 = scalar_lea.vmem [#allocation6], 32
  %v1035 = vld [vmem:[%s1034] sm:$0xff]
  %1037 = vrot.lane.b32.xlu0 %v1019, 64
  %v1038 = vpop.permute.xlu0 %1037
  %v1040 = vsub.f32 %v1033, %v1038
  %1042 = vrot.lane.b32.xlu0 %v1040, 64
  %v1043 = vpop.permute.xlu0 %1042
  %v1045 = vmul.f32 %v1035, %v1043
  %v1046 = vadd.f32 %v1019, %v1045
  %v1047 = vsub.f32 %v1031, %v1023
  %1049 = vrot.lane.b32.xlu0 %v1047, 64
  %v1050 = vpop.permute.xlu0 %1049
  %v1052 = vmul.f32 %v1035, %v1050
  %v1053 = vadd.f32 %v1020, %v1052
  %1054 = vst.msk [vmem:[#allocation3] sm:$0xff] %vm229, %v1053
  %1055 = vst.msk [vmem:[#allocation2] sm:$0xff] %vm229, %v1046
  %v1056 = vpack.c.bf16 %v1046, %v1046
  %1057 = vst.msk [vmem:[#allocation4] sm:$0xf] %vm240, %v1056
  %v1058 = vld [vmem:[%s597] sm:$0xff]
  %v1059 = vld [vmem:[%s597 + $0x8] sm:$0xff]
  %v1060 = vld [vmem:[%s592] sm:$0xff]
  %v1061 = vld [vmem:[%s592 + $0x8] sm:$0xff]
  %v1062 = vsel %vm267, %v1058, %v1060
  %v1063 = vsel %vm268, %v1059, %v1061
  %v1064 = vld [vmem:[#allocation4] sm:$0xf]
  %v1065 = vld [vmem:[%s3] sm:$0xff]
  %v1066 = vld [vmem:[%s3 + $0x8] sm:$0xff]
  %v1067 = vld [vmem:[%s3 + $0x10] sm:$0xff]
  %v1068 = vld [vmem:[%s3 + $0x18] sm:$0xff]
  %v1069 = vld [vmem:[%s3 + $0x20] sm:$0xff]
  %v1070 = vld [vmem:[%s3 + $0x28] sm:$0xff]
  %v1071 = vld [vmem:[%s3 + $0x30] sm:$0xff]
  %v1072 = vld [vmem:[%s3 + $0x38] sm:$0xff]
  %v1081 = vunpack.c.l.b16 %v1065
  %v1082 = vunpack.c.h.b16 %v1065
  %v1083 = vunpack.c.l.b16 %v1066
  %v1084 = vunpack.c.h.b16 %v1066
  %v1085 = vunpack.c.l.b16 %v1067
  %v1086 = vunpack.c.h.b16 %v1067
  %v1087 = vunpack.c.l.b16 %v1068
  %v1088 = vunpack.c.h.b16 %v1068
  %v1089 = vunpack.c.l.b16 %v1069
  %v1090 = vunpack.c.h.b16 %v1069
  %v1091 = vunpack.c.l.b16 %v1070
  %v1092 = vunpack.c.h.b16 %v1070
  %v1093 = vunpack.c.l.b16 %v1071
  %v1094 = vunpack.c.h.b16 %v1071
  %v1095 = vunpack.c.l.b16 %v1072
  %v1096 = vunpack.c.h.b16 %v1072
  %v1097 = vpack.c.b16 %v1083, %v1081
  %v1098 = vpack.c.b16 %v1084, %v1082
  %v1099 = vpack.c.b16 %v1087, %v1085
  %v1100 = vpack.c.b16 %v1088, %v1086
  %v1101 = vpack.c.b16 %v1091, %v1089
  %v1102 = vpack.c.b16 %v1092, %v1090
  %v1103 = vpack.c.b16 %v1095, %v1093
  %v1104 = vpack.c.b16 %v1096, %v1094
  %v1114 = vsel %vm229, %v1064, 0
  %1116 = vmatprep.subr.bf16.mxu0 0
  %1117 = vmatpush1.bf16.msra.mxu0 0
  %1118 = vmatprep.subr.bf16.mxu0 0
  %1119 = vmatpush1.bf16.msra.mxu0 0
  %1120 = vmatprep.subr.bf16.mxu0 0
  %1121 = vmatpush1.bf16.msra.mxu0 0
  %1122 = vmatprep.subr.bf16.mxu0 0
  %1123 = vmatpush1.bf16.msra.mxu0 0
  %1124 = vmatprep.subr.bf16.mxu0 %v1104
  %1125 = vmatpush1.bf16.msra.mxu0 %v1103
  %1126 = vmatprep.subr.bf16.mxu0 %v1102
  %1127 = vmatpush1.bf16.msra.mxu0 %v1101
  %1128 = vmatprep.subr.bf16.mxu0 %v1100
  %1129 = vmatpush1.bf16.msra.mxu0 %v1099
  %1130 = vmatprep.subr.bf16.mxu0 %v1098
  %1131 = vmatpush1.bf16.msra.mxu0 %v1097
  %1132 = vmatprep.subr.bf16.mxu0 0
  %1133 = vmatpush2.bf16.msra.mxu0 0
  %1134 = vmatprep.subr.bf16.mxu0 0
  %1135 = vmatpush2.bf16.msra.mxu0 0
  %1136 = vmatprep.subr.bf16.mxu0 0
  %1137 = vmatpush2.bf16.msra.mxu0 0
  %1138 = vmatprep.subr.bf16.mxu0 0
  %1139 = vmatpush2.bf16.msra.mxu0 0
  %1140 = vmatprep.subr.bf16.mxu0 0
  %1141 = vmatpush2.bf16.msra.mxu0 0
  %1142 = vmatprep.subr.bf16.mxu0 0
  %1143 = vmatpush2.bf16.msra.mxu0 0
  %1144 = vmatprep.subr.bf16.mxu0 0
  %1145 = vmatpush2.bf16.msra.mxu0 0
  %1146 = vmatprep.subr.bf16.mxu0 0
  %1147 = vmatpush2.bf16.msra.mxu0 0
  %1148 = vmatprep.mubr.bf16.mxu0 0
  %1149 = vmatmul.mubr.bf16.gmra.mxu0 %v1114
  %v1150 = vpop.f32.mrf.mxu0
  %v1151 = vadd.f32 0.0, %v1150
  %v1152 = vpop.f32.mrf.mxu0
  %v1153 = vadd.f32 0.0, %v1152
  %v1154 = vpop.f32.mrf.mxu0
  %v1155 = vpop.f32.mrf.mxu0
  %1156 = vdwg.mxu0
  %v1157 = vadd.f32 %v1062, %v1151
  %v1158 = vadd.f32 %v1063, %v1153
  %v1159 = vmul.f32 %v1157, 0.5
  %v1160 = vmul.f32 %v1158, 0.5
  %v1161 = vsel %vm273, %v1157, %v1159
  %v1162 = vsel %vm274, %v1158, %v1160
  %v1163 = vtanh.pop %v1161
  %v1164 = vtanh.pop %v1162
  %v1165 = vmul.f32 %v1163, 0.5
  %v1166 = vmul.f32 %v1164, 0.5
  %v1167 = vadd.f32 %v1165, 0.5
  %v1168 = vadd.f32 %v1166, 0.5
  %v1169 = vsel %vm273, %v1163, %v1167
  %v1170 = vsel %vm274, %v1164, %v1168
  %v1171 = vld [vmem:[#allocation2] sm:$0xff]
  %v1172 = vld [vmem:[#allocation3] sm:$0xff]
  %1174 = vrot.lane.b32.xlu0 %v1172, 64
  %v1175 = vpop.permute.xlu0 %1174
  %v1177 = vmul.f32 %v1169, %v1175
  %v1178 = vmul.f32 %v1169, %v1170
  %1180 = vrot.lane.b32.xlu0 %v1178, 64
  %v1181 = vpop.permute.xlu0 %1180
  %v1183 = vadd.f32 %v1177, %v1181
  %v1184 = vtanh.pop %v1183
  %v1185 = vmul.f32 %v1170, %v1184
  %s1186 = scalar_lea.vmem [#allocation6], 40
  %v1187 = vld [vmem:[%s1186] sm:$0xff]
  %1189 = vrot.lane.b32.xlu0 %v1171, 64
  %v1190 = vpop.permute.xlu0 %1189
  %v1192 = vsub.f32 %v1185, %v1190
  %1194 = vrot.lane.b32.xlu0 %v1192, 64
  %v1195 = vpop.permute.xlu0 %1194
  %v1197 = vmul.f32 %v1187, %v1195
  %v1198 = vadd.f32 %v1171, %v1197
  %v1199 = vsub.f32 %v1183, %v1175
  %1201 = vrot.lane.b32.xlu0 %v1199, 64
  %v1202 = vpop.permute.xlu0 %1201
  %v1204 = vmul.f32 %v1187, %v1202
  %v1205 = vadd.f32 %v1172, %v1204
  %1206 = vst.msk [vmem:[#allocation3] sm:$0xff] %vm229, %v1205
  %1207 = vst.msk [vmem:[#allocation2] sm:$0xff] %vm229, %v1198
  %v1208 = vpack.c.bf16 %v1198, %v1198
  %1209 = vst.msk [vmem:[#allocation4] sm:$0xf] %vm240, %v1208
  %v1210 = vld [vmem:[%s439] sm:$0xff]
  %v1211 = vld [vmem:[%s439 + $0x8] sm:$0xff]
  %v1212 = vld [vmem:[%s434] sm:$0xff]
  %v1213 = vld [vmem:[%s434 + $0x8] sm:$0xff]
  %v1214 = vsel %vm267, %v1210, %v1212
  %v1215 = vsel %vm268, %v1211, %v1213
  %v1216 = vld [vmem:[#allocation4] sm:$0xf]
  %v1217 = vld [vmem:[%s3] sm:$0xff]
  %v1218 = vld [vmem:[%s3 + $0x8] sm:$0xff]
  %v1219 = vld [vmem:[%s3 + $0x10] sm:$0xff]
  %v1220 = vld [vmem:[%s3 + $0x18] sm:$0xff]
  %v1221 = vld [vmem:[%s3 + $0x20] sm:$0xff]
  %v1222 = vld [vmem:[%s3 + $0x28] sm:$0xff]
  %v1223 = vld [vmem:[%s3 + $0x30] sm:$0xff]
  %v1224 = vld [vmem:[%s3 + $0x38] sm:$0xff]
  %v1233 = vunpack.c.l.b16 %v1217
  %v1234 = vunpack.c.h.b16 %v1217
  %v1235 = vunpack.c.l.b16 %v1218
  %v1236 = vunpack.c.h.b16 %v1218
  %v1237 = vunpack.c.l.b16 %v1219
  %v1238 = vunpack.c.h.b16 %v1219
  %v1239 = vunpack.c.l.b16 %v1220
  %v1240 = vunpack.c.h.b16 %v1220
  %v1241 = vunpack.c.l.b16 %v1221
  %v1242 = vunpack.c.h.b16 %v1221
  %v1243 = vunpack.c.l.b16 %v1222
  %v1244 = vunpack.c.h.b16 %v1222
  %v1245 = vunpack.c.l.b16 %v1223
  %v1246 = vunpack.c.h.b16 %v1223
  %v1247 = vunpack.c.l.b16 %v1224
  %v1248 = vunpack.c.h.b16 %v1224
  %v1249 = vpack.c.b16 %v1235, %v1233
  %v1250 = vpack.c.b16 %v1236, %v1234
  %v1251 = vpack.c.b16 %v1239, %v1237
  %v1252 = vpack.c.b16 %v1240, %v1238
  %v1253 = vpack.c.b16 %v1243, %v1241
  %v1254 = vpack.c.b16 %v1244, %v1242
  %v1255 = vpack.c.b16 %v1247, %v1245
  %v1256 = vpack.c.b16 %v1248, %v1246
  %v1266 = vsel %vm229, %v1216, 0
  %1268 = vmatprep.subr.bf16.mxu0 0
  %1269 = vmatpush1.bf16.msra.mxu0 0
  %1270 = vmatprep.subr.bf16.mxu0 0
  %1271 = vmatpush1.bf16.msra.mxu0 0
  %1272 = vmatprep.subr.bf16.mxu0 0
  %1273 = vmatpush1.bf16.msra.mxu0 0
  %1274 = vmatprep.subr.bf16.mxu0 0
  %1275 = vmatpush1.bf16.msra.mxu0 0
  %1276 = vmatprep.subr.bf16.mxu0 %v1256
  %1277 = vmatpush1.bf16.msra.mxu0 %v1255
  %1278 = vmatprep.subr.bf16.mxu0 %v1254
  %1279 = vmatpush1.bf16.msra.mxu0 %v1253
  %1280 = vmatprep.subr.bf16.mxu0 %v1252
  %1281 = vmatpush1.bf16.msra.mxu0 %v1251
  %1282 = vmatprep.subr.bf16.mxu0 %v1250
  %1283 = vmatpush1.bf16.msra.mxu0 %v1249
  %1284 = vmatprep.subr.bf16.mxu0 0
  %1285 = vmatpush2.bf16.msra.mxu0 0
  %1286 = vmatprep.subr.bf16.mxu0 0
  %1287 = vmatpush2.bf16.msra.mxu0 0
  %1288 = vmatprep.subr.bf16.mxu0 0
  %1289 = vmatpush2.bf16.msra.mxu0 0
  %1290 = vmatprep.subr.bf16.mxu0 0
  %1291 = vmatpush2.bf16.msra.mxu0 0
  %1292 = vmatprep.subr.bf16.mxu0 0
  %1293 = vmatpush2.bf16.msra.mxu0 0
  %1294 = vmatprep.subr.bf16.mxu0 0
  %1295 = vmatpush2.bf16.msra.mxu0 0
  %1296 = vmatprep.subr.bf16.mxu0 0
  %1297 = vmatpush2.bf16.msra.mxu0 0
  %1298 = vmatprep.subr.bf16.mxu0 0
  %1299 = vmatpush2.bf16.msra.mxu0 0
  %1300 = vmatprep.mubr.bf16.mxu0 0
  %1301 = vmatmul.mubr.bf16.gmra.mxu0 %v1266
  %v1302 = vpop.f32.mrf.mxu0
  %v1303 = vadd.f32 0.0, %v1302
  %v1304 = vpop.f32.mrf.mxu0
  %v1305 = vadd.f32 0.0, %v1304
  %v1306 = vpop.f32.mrf.mxu0
  %v1307 = vpop.f32.mrf.mxu0
  %1308 = vdwg.mxu0
  %v1309 = vadd.f32 %v1214, %v1303
  %v1310 = vadd.f32 %v1215, %v1305
  %v1311 = vmul.f32 %v1309, 0.5
  %v1312 = vmul.f32 %v1310, 0.5
  %v1313 = vsel %vm273, %v1309, %v1311
  %v1314 = vsel %vm274, %v1310, %v1312
  %v1315 = vtanh.pop %v1313
  %v1316 = vtanh.pop %v1314
  %v1317 = vmul.f32 %v1315, 0.5
  %v1318 = vmul.f32 %v1316, 0.5
  %v1319 = vadd.f32 %v1317, 0.5
  %v1320 = vadd.f32 %v1318, 0.5
  %v1321 = vsel %vm273, %v1315, %v1319
  %v1322 = vsel %vm274, %v1316, %v1320
  %v1323 = vld [vmem:[#allocation2] sm:$0xff]
  %v1324 = vld [vmem:[#allocation3] sm:$0xff]
  %1326 = vrot.lane.b32.xlu0 %v1324, 64
  %v1327 = vpop.permute.xlu0 %1326
  %v1329 = vmul.f32 %v1321, %v1327
  %v1330 = vmul.f32 %v1321, %v1322
  %1332 = vrot.lane.b32.xlu0 %v1330, 64
  %v1333 = vpop.permute.xlu0 %1332
  %v1335 = vadd.f32 %v1329, %v1333
  %v1336 = vtanh.pop %v1335
  %v1337 = vmul.f32 %v1322, %v1336
  %s1338 = scalar_lea.vmem [#allocation6], 48
  %v1339 = vld [vmem:[%s1338] sm:$0xff]
  %1341 = vrot.lane.b32.xlu0 %v1323, 64
  %v1342 = vpop.permute.xlu0 %1341
  %v1344 = vsub.f32 %v1337, %v1342
  %1346 = vrot.lane.b32.xlu0 %v1344, 64
  %v1347 = vpop.permute.xlu0 %1346
  %v1349 = vmul.f32 %v1339, %v1347
  %v1350 = vadd.f32 %v1323, %v1349
  %v1351 = vsub.f32 %v1335, %v1327
  %1353 = vrot.lane.b32.xlu0 %v1351, 64
  %v1354 = vpop.permute.xlu0 %1353
  %v1356 = vmul.f32 %v1339, %v1354
  %v1357 = vadd.f32 %v1324, %v1356
  %1358 = vst.msk [vmem:[#allocation3] sm:$0xff] %vm229, %v1357
  %1359 = vst.msk [vmem:[#allocation2] sm:$0xff] %vm229, %v1350
  %v1360 = vpack.c.bf16 %v1350, %v1350
  %1361 = vst.msk [vmem:[#allocation4] sm:$0xf] %vm240, %v1360
  %v1362 = vld [vmem:[%s282] sm:$0xff]
  %v1363 = vld [vmem:[%s282 + $0x8] sm:$0xff]
  %v1364 = vld [vmem:[%s277] sm:$0xff]
  %v1365 = vld [vmem:[%s277 + $0x8] sm:$0xff]
  %v1366 = vsel %vm267, %v1362, %v1364
  %v1367 = vsel %vm268, %v1363, %v1365
  %v1368 = vld [vmem:[#allocation4] sm:$0xf]
  %v1369 = vld [vmem:[%s3] sm:$0xff]
  %v1370 = vld [vmem:[%s3 + $0x8] sm:$0xff]
  %v1371 = vld [vmem:[%s3 + $0x10] sm:$0xff]
  %v1372 = vld [vmem:[%s3 + $0x18] sm:$0xff]
  %v1373 = vld [vmem:[%s3 + $0x20] sm:$0xff]
  %v1374 = vld [vmem:[%s3 + $0x28] sm:$0xff]
  %v1375 = vld [vmem:[%s3 + $0x30] sm:$0xff]
  %v1376 = vld [vmem:[%s3 + $0x38] sm:$0xff]
  %v1385 = vunpack.c.l.b16 %v1369
  %v1386 = vunpack.c.h.b16 %v1369
  %v1387 = vunpack.c.l.b16 %v1370
  %v1388 = vunpack.c.h.b16 %v1370
  %v1389 = vunpack.c.l.b16 %v1371
  %v1390 = vunpack.c.h.b16 %v1371
  %v1391 = vunpack.c.l.b16 %v1372
  %v1392 = vunpack.c.h.b16 %v1372
  %v1393 = vunpack.c.l.b16 %v1373
  %v1394 = vunpack.c.h.b16 %v1373
  %v1395 = vunpack.c.l.b16 %v1374
  %v1396 = vunpack.c.h.b16 %v1374
  %v1397 = vunpack.c.l.b16 %v1375
  %v1398 = vunpack.c.h.b16 %v1375
  %v1399 = vunpack.c.l.b16 %v1376
  %v1400 = vunpack.c.h.b16 %v1376
  %v1401 = vpack.c.b16 %v1387, %v1385
  %v1402 = vpack.c.b16 %v1388, %v1386
  %v1403 = vpack.c.b16 %v1391, %v1389
  %v1404 = vpack.c.b16 %v1392, %v1390
  %v1405 = vpack.c.b16 %v1395, %v1393
  %v1406 = vpack.c.b16 %v1396, %v1394
  %v1407 = vpack.c.b16 %v1399, %v1397
  %v1408 = vpack.c.b16 %v1400, %v1398
  %v1418 = vsel %vm229, %v1368, 0
  %1420 = vmatprep.subr.bf16.mxu0 0
  %1421 = vmatpush1.bf16.msra.mxu0 0
  %1422 = vmatprep.subr.bf16.mxu0 0
  %1423 = vmatpush1.bf16.msra.mxu0 0
  %1424 = vmatprep.subr.bf16.mxu0 0
  %1425 = vmatpush1.bf16.msra.mxu0 0
  %1426 = vmatprep.subr.bf16.mxu0 0
  %1427 = vmatpush1.bf16.msra.mxu0 0
  %1428 = vmatprep.subr.bf16.mxu0 %v1408
  %1429 = vmatpush1.bf16.msra.mxu0 %v1407
  %1430 = vmatprep.subr.bf16.mxu0 %v1406
  %1431 = vmatpush1.bf16.msra.mxu0 %v1405
  %1432 = vmatprep.subr.bf16.mxu0 %v1404
  %1433 = vmatpush1.bf16.msra.mxu0 %v1403
  %1434 = vmatprep.subr.bf16.mxu0 %v1402
  %1435 = vmatpush1.bf16.msra.mxu0 %v1401
  %1436 = vmatprep.subr.bf16.mxu0 0
  %1437 = vmatpush2.bf16.msra.mxu0 0
  %1438 = vmatprep.subr.bf16.mxu0 0
  %1439 = vmatpush2.bf16.msra.mxu0 0
  %1440 = vmatprep.subr.bf16.mxu0 0
  %1441 = vmatpush2.bf16.msra.mxu0 0
  %1442 = vmatprep.subr.bf16.mxu0 0
  %1443 = vmatpush2.bf16.msra.mxu0 0
  %1444 = vmatprep.subr.bf16.mxu0 0
  %1445 = vmatpush2.bf16.msra.mxu0 0
  %1446 = vmatprep.subr.bf16.mxu0 0
  %1447 = vmatpush2.bf16.msra.mxu0 0
  %1448 = vmatprep.subr.bf16.mxu0 0
  %1449 = vmatpush2.bf16.msra.mxu0 0
  %1450 = vmatprep.subr.bf16.mxu0 0
  %1451 = vmatpush2.bf16.msra.mxu0 0
  %1452 = vmatprep.mubr.bf16.mxu0 0
  %1453 = vmatmul.mubr.bf16.gmra.mxu0 %v1418
  %v1454 = vpop.f32.mrf.mxu0
  %v1455 = vadd.f32 0.0, %v1454
  %v1456 = vpop.f32.mrf.mxu0
  %v1457 = vadd.f32 0.0, %v1456
  %v1458 = vpop.f32.mrf.mxu0
  %v1459 = vpop.f32.mrf.mxu0
  %1460 = vdwg.mxu0
  %v1461 = vadd.f32 %v1366, %v1455
  %v1462 = vadd.f32 %v1367, %v1457
  %v1463 = vmul.f32 %v1461, 0.5
  %v1464 = vmul.f32 %v1462, 0.5
  %v1465 = vsel %vm273, %v1461, %v1463
  %v1466 = vsel %vm274, %v1462, %v1464
  %v1467 = vtanh.pop %v1465
  %v1468 = vtanh.pop %v1466
  %v1469 = vmul.f32 %v1467, 0.5
  %v1470 = vmul.f32 %v1468, 0.5
  %v1471 = vadd.f32 %v1469, 0.5
  %v1472 = vadd.f32 %v1470, 0.5
  %v1473 = vsel %vm273, %v1467, %v1471
  %v1474 = vsel %vm274, %v1468, %v1472
  %v1475 = vld [vmem:[#allocation2] sm:$0xff]
  %v1476 = vld [vmem:[#allocation3] sm:$0xff]
  %1478 = vrot.lane.b32.xlu0 %v1476, 64
  %v1479 = vpop.permute.xlu0 %1478
  %v1481 = vmul.f32 %v1473, %v1479
  %v1482 = vmul.f32 %v1473, %v1474
  %1484 = vrot.lane.b32.xlu0 %v1482, 64
  %v1485 = vpop.permute.xlu0 %1484
  %v1487 = vadd.f32 %v1481, %v1485
  %v1488 = vtanh.pop %v1487
  %v1489 = vmul.f32 %v1474, %v1488
  %s1490 = scalar_lea.vmem [#allocation6], 56
  %v1491 = vld [vmem:[%s1490] sm:$0xff]
  %1493 = vrot.lane.b32.xlu0 %v1475, 64
  %v1494 = vpop.permute.xlu0 %1493
  %v1496 = vsub.f32 %v1489, %v1494
  %1498 = vrot.lane.b32.xlu0 %v1496, 64
  %v1499 = vpop.permute.xlu0 %1498
  %v1501 = vmul.f32 %v1491, %v1499
  %v1502 = vadd.f32 %v1475, %v1501
  %v1503 = vsub.f32 %v1487, %v1479
  %1505 = vrot.lane.b32.xlu0 %v1503, 64
  %v1506 = vpop.permute.xlu0 %1505
  %v1508 = vmul.f32 %v1491, %v1506
  %v1509 = vadd.f32 %v1476, %v1508
  %1510 = vst.msk [vmem:[#allocation3] sm:$0xff] %vm229, %v1509
  %1511 = vst.msk [vmem:[#allocation2] sm:$0xff] %vm229, %v1502
  %v1512 = vpack.c.bf16 %v1502, %v1502
  %1513 = vst.msk [vmem:[#allocation4] sm:$0xf] %vm240, %v1512
  %v1514 = vld [vmem:[#allocation4] sm:$0xf]
  %v1515 = vld [vmem:[%s5] sm:$0xf]
  %v1516 = vld [vmem:[%s5 + $0x4] sm:$0xf]
  %v1517 = vld [vmem:[%s5 + $0x8] sm:$0xf]
  %v1518 = vld [vmem:[%s5 + $0xc] sm:$0xf]
  %v1519 = vld [vmem:[%s5 + $0x10] sm:$0xf]
  %v1520 = vld [vmem:[%s5 + $0x14] sm:$0xf]
  %v1521 = vld [vmem:[%s5 + $0x18] sm:$0xf]
  %v1522 = vld [vmem:[%s5 + $0x1c] sm:$0xf]
  %v1531 = vunpack.c.l.b16 %v1515
  %v1532 = vunpack.c.l.b16 %v1516
  %v1533 = vunpack.c.l.b16 %v1517
  %v1534 = vunpack.c.l.b16 %v1518
  %v1535 = vunpack.c.l.b16 %v1519
  %v1536 = vunpack.c.l.b16 %v1520
  %v1537 = vunpack.c.l.b16 %v1521
  %v1538 = vunpack.c.l.b16 %v1522
  %v1539 = vpack.c.b16 %v1532, %v1531
  %v1540 = vpack.c.b16 %v1534, %v1533
  %v1541 = vpack.c.b16 %v1536, %v1535
  %v1542 = vpack.c.b16 %v1538, %v1537
  %v1548 = vsel %vm229, %v1514, 0
  %1550 = vmatprep.subr.bf16.mxu0 0
  %1551 = vmatpush1.bf16.msra.mxu0 0
  %1552 = vmatprep.subr.bf16.mxu0 0
  %1553 = vmatpush1.bf16.msra.mxu0 0
  %1554 = vmatprep.subr.bf16.mxu0 0
  %1555 = vmatpush1.bf16.msra.mxu0 0
  %1556 = vmatprep.subr.bf16.mxu0 0
  %1557 = vmatpush1.bf16.msra.mxu0 0
  %1558 = vmatprep.subr.bf16.mxu0 0
  %1559 = vmatpush1.bf16.msra.mxu0 %v1542
  %1560 = vmatprep.subr.bf16.mxu0 0
  %1561 = vmatpush1.bf16.msra.mxu0 %v1541
  %1562 = vmatprep.subr.bf16.mxu0 0
  %1563 = vmatpush1.bf16.msra.mxu0 %v1540
  %1564 = vmatprep.subr.bf16.mxu0 0
  %1565 = vmatpush1.bf16.msra.mxu0 %v1539
  %1566 = vmatprep.subr.bf16.mxu0 0
  %1567 = vmatpush2.bf16.msra.mxu0 0
  %1568 = vmatprep.subr.bf16.mxu0 0
  %1569 = vmatpush2.bf16.msra.mxu0 0
  %1570 = vmatprep.subr.bf16.mxu0 0
  %1571 = vmatpush2.bf16.msra.mxu0 0
  %1572 = vmatprep.subr.bf16.mxu0 0
  %1573 = vmatpush2.bf16.msra.mxu0 0
  %1574 = vmatprep.subr.bf16.mxu0 0
  %1575 = vmatpush2.bf16.msra.mxu0 0
  %1576 = vmatprep.subr.bf16.mxu0 0
  %1577 = vmatpush2.bf16.msra.mxu0 0
  %1578 = vmatprep.subr.bf16.mxu0 0
  %1579 = vmatpush2.bf16.msra.mxu0 0
  %1580 = vmatprep.subr.bf16.mxu0 0
  %1581 = vmatpush2.bf16.msra.mxu0 0
  %1582 = vmatprep.mubr.bf16.mxu0 0
  %1583 = vmatmul.mubr.bf16.gmra.mxu0 %v1548
  %v1584 = vpop.f32.mrf.mxu0
  %v1585 = vadd.f32 0.0, %v1584
  %v1586 = vpop.f32.mrf.mxu0
  %v1587 = vpop.f32.mrf.mxu0
  %v1588 = vpop.f32.mrf.mxu0
  %1589 = vdwg.mxu0
  %1590 = vst [vmem:[%s6] sm:$0xff] %v1585
  // Predicated region
  $region26: #{sentiment_net_forward.1} parent=0 // pred_check
    _
  $region27: #{sentiment_net_forward.1} parent=0 // pred_check_branch
    %1592 = sbr.rel (0) target = $region29
  $region28: #{sentiment_net_forward.1} parent=0 // pred_region
    _
  $region29: #{sentiment_net_forward.1} parent=0 // pred_fallthru
    _
  // Predicated region
  $region30: #{sentiment_net_forward.1} parent=0 // pred_check
    _
  $region31: #{sentiment_net_forward.1} parent=0 // pred_check_branch
    %1594 = sbr.rel (0) target = $region33
  $region32: #{sentiment_net_forward.1} parent=0 // pred_region
    _
  $region33: #{sentiment_net_forward.1} parent=0 // pred_fallthru
    _

</llo_original>
